<compile_context>
chip_gen: v5e
topology: v5e:2x2
jax: 0.10.0
libtpu: 0.0.40
codegen_flags: <defaults>
</compile_context>

<pallas_src>
import jax
import jax.numpy as jnp
from jax import lax
from jax.experimental import pallas as pl
from jax.experimental.pallas import tpu as pltpu


# ---------------------------------------------------------------------------
# Helpers
# ---------------------------------------------------------------------------
def _round_up(x, m):
    return (x + m - 1) // m * m


def _pick_vocab_tile(v_pad, candidates=(512, 384, 256, 128)):
    for c in candidates:
        if v_pad % c == 0:
            return c
    return v_pad


# ---------------------------------------------------------------------------
# Pallas kernels
# ---------------------------------------------------------------------------
def lstm_chunk_kernel(x_ref, wih_ref, whh_ref, b_ref, out_ref, h_sc, c_sc, gates_sc):
    """One LSTM layer, one time-chunk per grid step (grid axis 0 = chunk, sequential).

    x_ref    : (Tc*Bp, D)   chunk of time-major-flattened inputs
    wih_ref  : (D, 4Hp)     input->gates weight, gate cols packed (i, f, o, g)
    whh_ref  : (Hp, 4Hp)    hidden->gates weight, same packing
    b_ref    : (1, 4Hp)     b_ih + b_hh, same packing
    out_ref  : (Tc*Bp, Hp)  hidden states for this chunk
    h_sc,c_sc: (Bp, Hp)     recurrence state carried across chunks (VMEM scratch)
    gates_sc : (Tc*Bp, 4Hp) hoisted input projection for the whole chunk
    """
    b_pad, h_pad = h_sc.shape
    t_chunk = gates_sc.shape[0] // b_pad

    @pl.when(pl.program_id(0) == 0)
    def _init():
        h_sc[...] = jnp.zeros_like(h_sc)
        c_sc[...] = jnp.zeros_like(c_sc)

    # Phase 1: hoisted input projection -- one big MXU matmul for the whole chunk.
    gates_sc[...] = (
        jnp.dot(x_ref[...], wih_ref[...], preferred_element_type=jnp.float32)
        + b_ref[...]
    )

    w_hh = whh_ref[...]  # loop-invariant; hoisted load

    # Phase 2: recurrence over the chunk's timesteps (only h @ W_hh on the critical path).
    def step(t, carry):
        h, c = carry
        off = pl.multiple_of(t * b_pad, b_pad)
        gates = gates_sc[pl.ds(off, b_pad), :] + jnp.dot(
            h, w_hh, preferred_element_type=jnp.float32
        )
        # Gate columns are packed (i, f, o, g): one wide sigmoid, one tanh.
        s = jax.nn.sigmoid(gates[:, 0:3 * h_pad])
        i_g = s[:, 0:h_pad]
        f_g = s[:, h_pad:2 * h_pad]
        o_g = s[:, 2 * h_pad:3 * h_pad]
        g_g = jnp.tanh(gates[:, 3 * h_pad:4 * h_pad])

        c_new = f_g * c + i_g * g_g
        h_new = o_g * jnp.tanh(c_new)
        out_ref[pl.ds(off, b_pad), :] = h_new.astype(out_ref.dtype)
        return h_new, c_new

    h_fin, c_fin = lax.fori_loop(
        0, t_chunk, step, (h_sc[...], c_sc[...]),
        unroll=True if t_chunk <= 8 else None,
    )
    h_sc[...] = h_fin
    c_sc[...] = c_fin


def fc_kernel(x_ref, w_ref, b_ref, o_ref):
    """Vocab-tiled fully-connected layer: (Bp, Hp) @ (Hp, TN) + (1, TN)."""
    o_ref[...] = (
        jnp.dot(x_ref[...], w_ref[...], preferred_element_type=jnp.float32)
        + b_ref[...]
    ).astype(o_ref.dtype)


# ---------------------------------------------------------------------------
# Wrappers
# ---------------------------------------------------------------------------
def lstm_layer(x_flat, w_ih_t, w_hh_t, b, *, b_pad, t_chunk):
    """x_flat: (Tp*Bp, D) time-major-flattened input.  Returns (Tp*Bp, Hp)."""
    tb, d = x_flat.shape
    hp4 = w_ih_t.shape[1]
    hp = hp4 // 4
    n_chunks = tb // (t_chunk * b_pad)

    return pl.pallas_call(
        lstm_chunk_kernel,
        out_shape=jax.ShapeDtypeStruct((tb, hp), jnp.float32),
        grid_spec=pltpu.PrefetchScalarGridSpec(
            num_scalar_prefetch=0,
            grid=(n_chunks,),
            in_specs=[
                pl.BlockSpec((t_chunk * b_pad, d), lambda c: (c, 0)),
                # Loop-invariant weights (constant index_map -> fetched once).
                # Production: add pipeline_mode=pl.Buffered(1) to single-buffer them.
                pl.BlockSpec((d, hp4), lambda c: (0, 0)),
                pl.BlockSpec((hp, hp4), lambda c: (0, 0)),
                pl.BlockSpec((1, hp4), lambda c: (0, 0)),
            ],
            out_specs=pl.BlockSpec((t_chunk * b_pad, hp), lambda c: (c, 0)),
            scratch_shapes=[
                pltpu.VMEM((b_pad, hp), jnp.float32),          # h carry
                pltpu.VMEM((b_pad, hp), jnp.float32),          # c carry
                pltpu.VMEM((t_chunk * b_pad, hp4), jnp.float32),  # hoisted gates_in
            ],
        ),
        compiler_params=pltpu.CompilerParams(
            dimension_semantics=("arbitrary",),  # recurrence across chunks -> sequential
        ),
    )(x_flat, w_ih_t, w_hh_t, b)


def fc_layer(h_last, w_fc_t, b_fc):
    """h_last: (Bp, Hp); w_fc_t: (Hp, Vp); b_fc: (1, Vp).  Returns (Bp, Vp)."""
    bp, hp = h_last.shape
    vp = w_fc_t.shape[1]
    tn = _pick_vocab_tile(vp)
    return pl.pallas_call(
        fc_kernel,
        out_shape=jax.ShapeDtypeStruct((bp, vp), jnp.float32),
        grid=(vp // tn,),
        in_specs=[
            pl.BlockSpec((bp, hp), lambda j: (0, 0)),
            pl.BlockSpec((hp, tn), lambda j: (0, j)),
            pl.BlockSpec((1, tn), lambda j: (0, j)),
        ],
        out_specs=pl.BlockSpec((bp, tn), lambda j: (0, j)),
        compiler_params=pltpu.CompilerParams(
            dimension_semantics=("parallel",),
        ),
    )(h_last, w_fc_t, b_fc)


# ---------------------------------------------------------------------------
# One-time parameter preparation (outside the forward path)
# ---------------------------------------------------------------------------
def prepare_params(params):
    """Transpose weights, fuse biases, reorder gate columns (i,f,g,o)->(i,f,o,g),
    and zero-pad H / V to 128-lane multiples.  Done once at load time."""
    h = params["lstm_layers"][0]["w_hh"].shape[1]
    v = params["fc_w"].shape[0]
    hp = _round_up(h, 128)
    vp = _round_up(v, 128)

    def pack_gates(w, in_pad):
        # w: (4H, D) in PyTorch (i, f, g, o) row order -> (in_pad, 4Hp), cols (i, f, o, g)
        wi, wf, wg, wo = jnp.split(w, 4, axis=0)
        d = w.shape[1]
        cols = []
        for g in (wi, wf, wo, wg):
            cols.append(jnp.pad(g.T, ((0, in_pad - d), (0, hp - h))))
        return jnp.concatenate(cols, axis=1)

    def pack_bias(b_ih, b_hh):
        b = b_ih + b_hh
        bi, bf, bg, bo = jnp.split(b, 4)
        parts = [jnp.pad(x, (0, hp - h)) for x in (bi, bf, bo, bg)]
        return jnp.concatenate(parts)[None, :]  # (1, 4Hp)

    layers = []
    for idx, layer in enumerate(params["lstm_layers"]):
        d_in = layer["w_ih"].shape[1]
        in_pad = d_in if idx == 0 else hp  # layers >= 1 consume the padded hidden
        layers.append({
            "w_ih_t": pack_gates(layer["w_ih"], in_pad),
            "w_hh_t": pack_gates(layer["w_hh"], hp),
            "b": pack_bias(layer["b_ih"], layer["b_hh"]),
        })

    return {
        "embedding": params["embedding"],
        "layers": layers,
        "fc_w_t": jnp.pad(params["fc_w"].T, ((0, hp - h), (0, vp - v))),  # (Hp, Vp)
        "fc_b": jnp.pad(params["fc_b"], (0, vp - v))[None, :],            # (1, Vp)
        "hidden_pad": hp,
        "vocab": v,
    }


# ---------------------------------------------------------------------------
# Forward pass
# ---------------------------------------------------------------------------
def lstm_model_forward(tokens, prepped, *, t_chunk=32):
    """Pallas forward pass matching LSTMModel.forward (batch-first tokens (B, T))."""
    b, t = tokens.shape
    bp = _round_up(max(b, 8), 8)
    tc = min(t_chunk, t)
    tp = _round_up(t, tc)

    # Embedding gather directly in time-major order (no activation transpose).
    # TODO(synk): the gather itself stays as XLA glue; a Pallas scalar-prefetch gather
    # kernel is only worthwhile for very large embedding tables.
    x_tm = jnp.take(prepped["embedding"], tokens.T, axis=0)        # (T, B, E)
    x_tm = jnp.pad(x_tm, ((0, tp - t), (0, bp - b), (0, 0)))       # (Tp, Bp, E)
    x_flat = x_tm.reshape(tp * bp, -1)                             # (Tp*Bp, E)

    for layer in prepped["layers"]:
        x_flat = lstm_layer(x_flat, layer["w_ih_t"], layer["w_hh_t"], layer["b"],
                            b_pad=bp, t_chunk=tc)                  # (Tp*Bp, Hp)

    # Last real timestep's hidden state == out[:, -1, :] in batch-first layout.
    h_last = x_flat[(t - 1) * bp:t * bp, :]                        # (Bp, Hp)
    logits_p = fc_layer(h_last, prepped["fc_w_t"], prepped["fc_b"])  # (Bp, Vp)
    return logits_p[:b, :prepped["vocab"]]                         # (B, V)


# ---------------------------------------------------------------------------
# Pure-JAX reference (same math, unpadded) for a sanity check
# ---------------------------------------------------------------------------
def lstm_model_reference(tokens, params):
    x = jnp.take(params["embedding"], tokens, axis=0)   # (B, T, E)
    b = x.shape[0]
    for layer in params["lstm_layers"]:
        w_ih, w_hh = layer["w_ih"], layer["w_hh"]
        bias = layer["b_ih"] + layer["b_hh"]
        h_dim = w_hh.shape[1]

        def step(carry, x_t):
            h, c = carry
            gates = x_t @ w_ih.T + h @ w_hh.T + bias
            i = jax.nn.sigmoid(gates[:, 0:h_dim])
            f = jax.nn.sigmoid(gates[:, h_dim:2 * h_dim])
            g = jnp.tanh(gates[:, 2 * h_dim:3 * h_dim])
            o = jax.nn.sigmoid(gates[:, 3 * h_dim:4 * h_dim])
            c = f * c + i * g
            h = o * jnp.tanh(c)
            return (h, c), h

        init = (jnp.zeros((b, h_dim), jnp.float32), jnp.zeros((b, h_dim), jnp.float32))
        _, hs = lax.scan(step, init, jnp.transpose(x, (1, 0, 2)))
        x = jnp.transpose(hs, (1, 0, 2))
    h_last = x[:, -1, :]
    return h_last @ params["fc_w"].T + params["fc_b"]


# ---------------------------------------------------------------------------
# Parameter construction (deterministic, synthetic)
# ---------------------------------------------------------------------------
def init_params(key, vocab_size, embedding_dim, hidden_dim, num_layers):
    keys = jax.random.split(key, 2 + 4 * num_layers + 2)
    k = iter(keys)
    params = {
        "embedding": 0.1 * jax.random.normal(next(k), (vocab_size, embedding_dim),
                                             dtype=jnp.float32),
        "lstm_layers": [],
    }
    for layer_idx in range(num_layers):
        in_dim = embedding_dim if layer_idx == 0 else hidden_dim
        params["lstm_layers"].append({
            "w_ih": 0.1 * jax.random.normal(next(k), (4 * hidden_dim, in_dim),
                                            dtype=jnp.float32),
            "w_hh": 0.1 * jax.random.normal(next(k), (4 * hidden_dim, hidden_dim),
                                            dtype=jnp.float32),
            "b_ih": 0.1 * jax.random.normal(next(k), (4 * hidden_dim,),
                                            dtype=jnp.float32),
            "b_hh": 0.1 * jax.random.normal(next(k), (4 * hidden_dim,),
                                            dtype=jnp.float32),
        })
    params["fc_w"] = 0.1 * jax.random.normal(next(k), (vocab_size, hidden_dim),
                                             dtype=jnp.float32)
    params["fc_b"] = 0.1 * jax.random.normal(next(k), (vocab_size,),
                                             dtype=jnp.float32)
    return params


# ---------------------------------------------------------------------------
if __name__ == "__main__":
    vocab_size, embedding_dim, hidden_dim, num_layers = 32, 16, 32, 2
    batch, seq_len = 2, 8

    root = jax.random.PRNGKey(0)
    key_params, key_tokens = jax.random.split(root)

    params = init_params(key_params, vocab_size, embedding_dim, hidden_dim, num_layers)
    prepped = prepare_params(params)   # one-time prep, outside the forward path
    tokens = jax.random.randint(key_tokens, (batch, seq_len), 0, vocab_size,
                                dtype=jnp.int32)

    logits = jax.block_until_ready(lstm_model_forward(tokens, prepped))
    ref = jax.block_until_ready(lstm_model_reference(tokens, params))

    assert logits.shape == (batch, vocab_size)
    assert jnp.allclose(logits, ref, atol=1e-5, rtol=1e-5), "Pallas vs reference mismatch"

    print("KERNEL_OK")
</pallas_src>

<mosaic_0001>
module attributes {stable_mosaic.version = 11 : i64} {
  func.func @lstm_chunk_kernel(%arg0: i32, %arg1: memref<64x16xf32, #tpu.memory_space<vmem>>, %arg2: memref<16x512xf32, #tpu.memory_space<vmem>>, %arg3: memref<128x512xf32, #tpu.memory_space<vmem>>, %arg4: memref<1x512xf32, #tpu.memory_space<vmem>>, %arg5: memref<64x128xf32, #tpu.memory_space<vmem>>, %arg6: memref<8x128xf32, #tpu.memory_space<vmem>>, %arg7: memref<8x128xf32, #tpu.memory_space<vmem>>, %arg8: memref<64x512xf32, #tpu.memory_space<vmem>>) attributes {dimension_semantics = [#tpu.dimension_semantics<arbitrary>], iteration_bounds = array<i64: 1>, scalar_prefetch = 0 : i64, scratch_operands = 3 : i64, tpu.core_type = #tpu.core_type<tc>, window_params = [{transform_indices = @transform_0, window_bounds = array<i64: 64, 16>}, {pipeline_mode = #tpu.pipeline_mode<synchronous>, transform_indices = @transform_1, window_bounds = array<i64: 16, 512>}, {pipeline_mode = #tpu.pipeline_mode<synchronous>, transform_indices = @transform_2, window_bounds = array<i64: 128, 512>}, {pipeline_mode = #tpu.pipeline_mode<synchronous>, transform_indices = @transform_3, window_bounds = array<i64: 1, 512>}, {transform_indices = @transform_4, window_bounds = array<i64: 64, 128>}]} {
    %c0_i32 = arith.constant 0 : i32
    %0 = arith.cmpi eq, %arg0, %c0_i32 : i32
    %1 = arith.extui %0 : i1 to i32
    %c0_i32_0 = arith.constant 0 : i32
    %2 = arith.cmpi ne, %1, %c0_i32_0 : i32
    scf.if %2 {
      %cst_59 = arith.constant 0.000000e+00 : f32
      %207 = vector.broadcast %cst_59 : f32 to vector<8x128xf32>
      %c0_60 = arith.constant 0 : index
      %c0_61 = arith.constant 0 : index
      %208 = vector.load %arg6[%c0_60, %c0_61] : memref<8x128xf32, #tpu.memory_space<vmem>>, vector<8x128xf32>
      tpu.vector_store %arg6[%c0_60, %c0_61], %207 {strides = array<i32>} : memref<8x128xf32, #tpu.memory_space<vmem>>, vector<8x128xf32>,
      %cst_62 = arith.constant 0.000000e+00 : f32
      %209 = vector.broadcast %cst_62 : f32 to vector<8x128xf32>
      %c0_63 = arith.constant 0 : index
      %c0_64 = arith.constant 0 : index
      %210 = vector.load %arg7[%c0_63, %c0_64] : memref<8x128xf32, #tpu.memory_space<vmem>>, vector<8x128xf32>
      tpu.vector_store %arg7[%c0_63, %c0_64], %209 {strides = array<i32>} : memref<8x128xf32, #tpu.memory_space<vmem>>, vector<8x128xf32>,
    } else {
    }
    %c0 = arith.constant 0 : index
    %c0_1 = arith.constant 0 : index
    %3 = vector.load %arg1[%c0, %c0_1] : memref<64x16xf32, #tpu.memory_space<vmem>>, vector<64x16xf32>
    %c0_2 = arith.constant 0 : index
    %c0_3 = arith.constant 0 : index
    %4 = vector.load %arg2[%c0_2, %c0_3] : memref<16x512xf32, #tpu.memory_space<vmem>>, vector<16x512xf32>
    %cst = arith.constant dense<0.000000e+00> : vector<64x512xf32>
    %5 = tpu.matmul %3, %4, %cst {dimension_numbers = #tpu.dot_dimension_numbers<[1], [0], [0], [1], [0, 0, 1, 1], [], []>} : vector<64x16xf32>, vector<16x512xf32>, vector<64x512xf32> -> vector<64x512xf32>
    %c0_4 = arith.constant 0 : index
    %c0_5 = arith.constant 0 : index
    %6 = vector.load %arg4[%c0_4, %c0_5] : memref<1x512xf32, #tpu.memory_space<vmem>>, vector<1x512xf32>
    %7 = vector.broadcast %6 : vector<1x512xf32> to vector<64x512xf32>
    %8 = arith.addf %5, %7 : vector<64x512xf32>
    %c0_6 = arith.constant 0 : index
    %c0_7 = arith.constant 0 : index
    %9 = vector.load %arg8[%c0_6, %c0_7] : memref<64x512xf32, #tpu.memory_space<vmem>>, vector<64x512xf32>
    tpu.vector_store %arg8[%c0_6, %c0_7], %8 {strides = array<i32>} : memref<64x512xf32, #tpu.memory_space<vmem>>, vector<64x512xf32>,
    %c0_8 = arith.constant 0 : index
    %c0_9 = arith.constant 0 : index
    %10 = vector.load %arg3[%c0_8, %c0_9] : memref<128x512xf32, #tpu.memory_space<vmem>>, vector<128x512xf32>
    %c0_10 = arith.constant 0 : index
    %c0_11 = arith.constant 0 : index
    %11 = vector.load %arg6[%c0_10, %c0_11] : memref<8x128xf32, #tpu.memory_space<vmem>>, vector<8x128xf32>
    %c0_12 = arith.constant 0 : index
    %c0_13 = arith.constant 0 : index
    %12 = vector.load %arg7[%c0_12, %c0_13] : memref<8x128xf32, #tpu.memory_space<vmem>>, vector<8x128xf32>
    %c0_i32_14 = arith.constant 0 : i32
    %c8_i32 = arith.constant 8 : i32
    %13 = arith.muli %c0_i32_14, %c8_i32 : i32
    %14 = tpu.assume_multiple %13, 8 : i32
    %15 = arith.index_cast %14 : i32 to index
    %c0_15 = arith.constant 0 : index
    %16 = vector.load %arg8[%15, %c0_15] : memref<64x512xf32, #tpu.memory_space<vmem>>, vector<8x512xf32>
    %cst_16 = arith.constant dense<0.000000e+00> : vector<8x512xf32>
    %17 = tpu.matmul %11, %10, %cst_16 {dimension_numbers = #tpu.dot_dimension_numbers<[1], [0], [0], [1], [0, 0, 1, 1], [], []>} : vector<8x128xf32>, vector<128x512xf32>, vector<8x512xf32> -> vector<8x512xf32>
    %18 = arith.addf %16, %17 : vector<8x512xf32>
    %19 = vector.extract_strided_slice %18 {offsets = [0, 0], sizes = [8, 384], strides = [1, 1]} : vector<8x512xf32> to vector<8x384xf32>
    %20 = arith.negf %19 : vector<8x384xf32>
    %21 = math.exp %20 : vector<8x384xf32>
    %cst_17 = arith.constant 1.000000e+00 : f32
    %22 = vector.broadcast %cst_17 : f32 to vector<8x384xf32>
    %23 = arith.addf %22, %21 : vector<8x384xf32>
    %24 = arith.divf %22, %23 : vector<8x384xf32>
    %25 = vector.extract_strided_slice %24 {offsets = [0, 0], sizes = [8, 128], strides = [1, 1]} : vector<8x384xf32> to vector<8x128xf32>
    %26 = vector.extract_strided_slice %24 {offsets = [0, 128], sizes = [8, 128], strides = [1, 1]} : vector<8x384xf32> to vector<8x128xf32>
    %27 = vector.extract_strided_slice %24 {offsets = [0, 256], sizes = [8, 128], strides = [1, 1]} : vector<8x384xf32> to vector<8x128xf32>
    %28 = vector.extract_strided_slice %18 {offsets = [0, 384], sizes = [8, 128], strides = [1, 1]} : vector<8x512xf32> to vector<8x128xf32>
    %29 = math.tanh %28 : vector<8x128xf32>
    %30 = arith.mulf %26, %12 : vector<8x128xf32>
    %31 = arith.mulf %25, %29 : vector<8x128xf32>
    %32 = arith.addf %30, %31 : vector<8x128xf32>
    %33 = math.tanh %32 : vector<8x128xf32>
    %34 = arith.mulf %27, %33 : vector<8x128xf32>
    %35 = arith.index_cast %14 : i32 to index
    %c0_18 = arith.constant 0 : index
    %36 = vector.load %arg5[%35, %c0_18] : memref<64x128xf32, #tpu.memory_space<vmem>>, vector<8x128xf32>
    tpu.vector_store %arg5[%35, %c0_18], %34 {strides = array<i32>} : memref<64x128xf32, #tpu.memory_space<vmem>>, vector<8x128xf32>,
    %c1_i32 = arith.constant 1 : i32
    %c8_i32_19 = arith.constant 8 : i32
    %37 = arith.muli %c1_i32, %c8_i32_19 : i32
    %38 = tpu.assume_multiple %37, 8 : i32
    %39 = arith.index_cast %38 : i32 to index
    %c0_20 = arith.constant 0 : index
    %40 = vector.load %arg8[%39, %c0_20] : memref<64x512xf32, #tpu.memory_space<vmem>>, vector<8x512xf32>
    %cst_21 = arith.constant dense<0.000000e+00> : vector<8x512xf32>
    %41 = tpu.matmul %34, %10, %cst_21 {dimension_numbers = #tpu.dot_dimension_numbers<[1], [0], [0], [1], [0, 0, 1, 1], [], []>} : vector<8x128xf32>, vector<128x512xf32>, vector<8x512xf32> -> vector<8x512xf32>
    %42 = arith.addf %40, %41 : vector<8x512xf32>
    %43 = vector.extract_strided_slice %42 {offsets = [0, 0], sizes = [8, 384], strides = [1, 1]} : vector<8x512xf32> to vector<8x384xf32>
    %44 = arith.negf %43 : vector<8x384xf32>
    %45 = math.exp %44 : vector<8x384xf32>
    %cst_22 = arith.constant 1.000000e+00 : f32
    %46 = vector.broadcast %cst_22 : f32 to vector<8x384xf32>
    %47 = arith.addf %46, %45 : vector<8x384xf32>
    %48 = arith.divf %46, %47 : vector<8x384xf32>
    %49 = vector.extract_strided_slice %48 {offsets = [0, 0], sizes = [8, 128], strides = [1, 1]} : vector<8x384xf32> to vector<8x128xf32>
    %50 = vector.extract_strided_slice %48 {offsets = [0, 128], sizes = [8, 128], strides = [1, 1]} : vector<8x384xf32> to vector<8x128xf32>
    %51 = vector.extract_strided_slice %48 {offsets = [0, 256], sizes = [8, 128], strides = [1, 1]} : vector<8x384xf32> to vector<8x128xf32>
    %52 = vector.extract_strided_slice %42 {offsets = [0, 384], sizes = [8, 128], strides = [1, 1]} : vector<8x512xf32> to vector<8x128xf32>
    %53 = math.tanh %52 : vector<8x128xf32>
    %54 = arith.mulf %50, %32 : vector<8x128xf32>
    %55 = arith.mulf %49, %53 : vector<8x128xf32>
    %56 = arith.addf %54, %55 : vector<8x128xf32>
    %57 = math.tanh %56 : vector<8x128xf32>
    %58 = arith.mulf %51, %57 : vector<8x128xf32>
    %59 = arith.index_cast %38 : i32 to index
    %c0_23 = arith.constant 0 : index
    %60 = vector.load %arg5[%59, %c0_23] : memref<64x128xf32, #tpu.memory_space<vmem>>, vector<8x128xf32>
    tpu.vector_store %arg5[%59, %c0_23], %58 {strides = array<i32>} : memref<64x128xf32, #tpu.memory_space<vmem>>, vector<8x128xf32>,
    %c2_i32 = arith.constant 2 : i32
    %c8_i32_24 = arith.constant 8 : i32
    %61 = arith.muli %c2_i32, %c8_i32_24 : i32
    %62 = tpu.assume_multiple %61, 8 : i32
    %63 = arith.index_cast %62 : i32 to index
    %c0_25 = arith.constant 0 : index
    %64 = vector.load %arg8[%63, %c0_25] : memref<64x512xf32, #tpu.memory_space<vmem>>, vector<8x512xf32>
    %cst_26 = arith.constant dense<0.000000e+00> : vector<8x512xf32>
    %65 = tpu.matmul %58, %10, %cst_26 {dimension_numbers = #tpu.dot_dimension_numbers<[1], [0], [0], [1], [0, 0, 1, 1], [], []>} : vector<8x128xf32>, vector<128x512xf32>, vector<8x512xf32> -> vector<8x512xf32>
    %66 = arith.addf %64, %65 : vector<8x512xf32>
    %67 = vector.extract_strided_slice %66 {offsets = [0, 0], sizes = [8, 384], strides = [1, 1]} : vector<8x512xf32> to vector<8x384xf32>
    %68 = arith.negf %67 : vector<8x384xf32>
    %69 = math.exp %68 : vector<8x384xf32>
    %cst_27 = arith.constant 1.000000e+00 : f32
    %70 = vector.broadcast %cst_27 : f32 to vector<8x384xf32>
    %71 = arith.addf %70, %69 : vector<8x384xf32>
    %72 = arith.divf %70, %71 : vector<8x384xf32>
    %73 = vector.extract_strided_slice %72 {offsets = [0, 0], sizes = [8, 128], strides = [1, 1]} : vector<8x384xf32> to vector<8x128xf32>
    %74 = vector.extract_strided_slice %72 {offsets = [0, 128], sizes = [8, 128], strides = [1, 1]} : vector<8x384xf32> to vector<8x128xf32>
    %75 = vector.extract_strided_slice %72 {offsets = [0, 256], sizes = [8, 128], strides = [1, 1]} : vector<8x384xf32> to vector<8x128xf32>
    %76 = vector.extract_strided_slice %66 {offsets = [0, 384], sizes = [8, 128], strides = [1, 1]} : vector<8x512xf32> to vector<8x128xf32>
    %77 = math.tanh %76 : vector<8x128xf32>
    %78 = arith.mulf %74, %56 : vector<8x128xf32>
    %79 = arith.mulf %73, %77 : vector<8x128xf32>
    %80 = arith.addf %78, %79 : vector<8x128xf32>
    %81 = math.tanh %80 : vector<8x128xf32>
    %82 = arith.mulf %75, %81 : vector<8x128xf32>
    %83 = arith.index_cast %62 : i32 to index
    %c0_28 = arith.constant 0 : index
    %84 = vector.load %arg5[%83, %c0_28] : memref<64x128xf32, #tpu.memory_space<vmem>>, vector<8x128xf32>
    tpu.vector_store %arg5[%83, %c0_28], %82 {strides = array<i32>} : memref<64x128xf32, #tpu.memory_space<vmem>>, vector<8x128xf32>,
    %c3_i32 = arith.constant 3 : i32
    %c8_i32_29 = arith.constant 8 : i32
    %85 = arith.muli %c3_i32, %c8_i32_29 : i32
    %86 = tpu.assume_multiple %85, 8 : i32
    %87 = arith.index_cast %86 : i32 to index
    %c0_30 = arith.constant 0 : index
    %88 = vector.load %arg8[%87, %c0_30] : memref<64x512xf32, #tpu.memory_space<vmem>>, vector<8x512xf32>
    %cst_31 = arith.constant dense<0.000000e+00> : vector<8x512xf32>
    %89 = tpu.matmul %82, %10, %cst_31 {dimension_numbers = #tpu.dot_dimension_numbers<[1], [0], [0], [1], [0, 0, 1, 1], [], []>} : vector<8x128xf32>, vector<128x512xf32>, vector<8x512xf32> -> vector<8x512xf32>
    %90 = arith.addf %88, %89 : vector<8x512xf32>
    %91 = vector.extract_strided_slice %90 {offsets = [0, 0], sizes = [8, 384], strides = [1, 1]} : vector<8x512xf32> to vector<8x384xf32>
    %92 = arith.negf %91 : vector<8x384xf32>
    %93 = math.exp %92 : vector<8x384xf32>
    %cst_32 = arith.constant 1.000000e+00 : f32
    %94 = vector.broadcast %cst_32 : f32 to vector<8x384xf32>
    %95 = arith.addf %94, %93 : vector<8x384xf32>
    %96 = arith.divf %94, %95 : vector<8x384xf32>
    %97 = vector.extract_strided_slice %96 {offsets = [0, 0], sizes = [8, 128], strides = [1, 1]} : vector<8x384xf32> to vector<8x128xf32>
    %98 = vector.extract_strided_slice %96 {offsets = [0, 128], sizes = [8, 128], strides = [1, 1]} : vector<8x384xf32> to vector<8x128xf32>
    %99 = vector.extract_strided_slice %96 {offsets = [0, 256], sizes = [8, 128], strides = [1, 1]} : vector<8x384xf32> to vector<8x128xf32>
    %100 = vector.extract_strided_slice %90 {offsets = [0, 384], sizes = [8, 128], strides = [1, 1]} : vector<8x512xf32> to vector<8x128xf32>
    %101 = math.tanh %100 : vector<8x128xf32>
    %102 = arith.mulf %98, %80 : vector<8x128xf32>
    %103 = arith.mulf %97, %101 : vector<8x128xf32>
    %104 = arith.addf %102, %103 : vector<8x128xf32>
    %105 = math.tanh %104 : vector<8x128xf32>
    %106 = arith.mulf %99, %105 : vector<8x128xf32>
    %107 = arith.index_cast %86 : i32 to index
    %c0_33 = arith.constant 0 : index
    %108 = vector.load %arg5[%107, %c0_33] : memref<64x128xf32, #tpu.memory_space<vmem>>, vector<8x128xf32>
    tpu.vector_store %arg5[%107, %c0_33], %106 {strides = array<i32>} : memref<64x128xf32, #tpu.memory_space<vmem>>, vector<8x128xf32>,
    %c4_i32 = arith.constant 4 : i32
    %c8_i32_34 = arith.constant 8 : i32
    %109 = arith.muli %c4_i32, %c8_i32_34 : i32
    %110 = tpu.assume_multiple %109, 8 : i32
    %111 = arith.index_cast %110 : i32 to index
    %c0_35 = arith.constant 0 : index
    %112 = vector.load %arg8[%111, %c0_35] : memref<64x512xf32, #tpu.memory_space<vmem>>, vector<8x512xf32>
    %cst_36 = arith.constant dense<0.000000e+00> : vector<8x512xf32>
    %113 = tpu.matmul %106, %10, %cst_36 {dimension_numbers = #tpu.dot_dimension_numbers<[1], [0], [0], [1], [0, 0, 1, 1], [], []>} : vector<8x128xf32>, vector<128x512xf32>, vector<8x512xf32> -> vector<8x512xf32>
    %114 = arith.addf %112, %113 : vector<8x512xf32>
    %115 = vector.extract_strided_slice %114 {offsets = [0, 0], sizes = [8, 384], strides = [1, 1]} : vector<8x512xf32> to vector<8x384xf32>
    %116 = arith.negf %115 : vector<8x384xf32>
    %117 = math.exp %116 : vector<8x384xf32>
    %cst_37 = arith.constant 1.000000e+00 : f32
    %118 = vector.broadcast %cst_37 : f32 to vector<8x384xf32>
    %119 = arith.addf %118, %117 : vector<8x384xf32>
    %120 = arith.divf %118, %119 : vector<8x384xf32>
    %121 = vector.extract_strided_slice %120 {offsets = [0, 0], sizes = [8, 128], strides = [1, 1]} : vector<8x384xf32> to vector<8x128xf32>
    %122 = vector.extract_strided_slice %120 {offsets = [0, 128], sizes = [8, 128], strides = [1, 1]} : vector<8x384xf32> to vector<8x128xf32>
    %123 = vector.extract_strided_slice %120 {offsets = [0, 256], sizes = [8, 128], strides = [1, 1]} : vector<8x384xf32> to vector<8x128xf32>
    %124 = vector.extract_strided_slice %114 {offsets = [0, 384], sizes = [8, 128], strides = [1, 1]} : vector<8x512xf32> to vector<8x128xf32>
    %125 = math.tanh %124 : vector<8x128xf32>
    %126 = arith.mulf %122, %104 : vector<8x128xf32>
    %127 = arith.mulf %121, %125 : vector<8x128xf32>
    %128 = arith.addf %126, %127 : vector<8x128xf32>
    %129 = math.tanh %128 : vector<8x128xf32>
    %130 = arith.mulf %123, %129 : vector<8x128xf32>
    %131 = arith.index_cast %110 : i32 to index
    %c0_38 = arith.constant 0 : index
    %132 = vector.load %arg5[%131, %c0_38] : memref<64x128xf32, #tpu.memory_space<vmem>>, vector<8x128xf32>
    tpu.vector_store %arg5[%131, %c0_38], %130 {strides = array<i32>} : memref<64x128xf32, #tpu.memory_space<vmem>>, vector<8x128xf32>,
    %c5_i32 = arith.constant 5 : i32
    %c8_i32_39 = arith.constant 8 : i32
    %133 = arith.muli %c5_i32, %c8_i32_39 : i32
    %134 = tpu.assume_multiple %133, 8 : i32
    %135 = arith.index_cast %134 : i32 to index
    %c0_40 = arith.constant 0 : index
    %136 = vector.load %arg8[%135, %c0_40] : memref<64x512xf32, #tpu.memory_space<vmem>>, vector<8x512xf32>
    %cst_41 = arith.constant dense<0.000000e+00> : vector<8x512xf32>
    %137 = tpu.matmul %130, %10, %cst_41 {dimension_numbers = #tpu.dot_dimension_numbers<[1], [0], [0], [1], [0, 0, 1, 1], [], []>} : vector<8x128xf32>, vector<128x512xf32>, vector<8x512xf32> -> vector<8x512xf32>
    %138 = arith.addf %136, %137 : vector<8x512xf32>
    %139 = vector.extract_strided_slice %138 {offsets = [0, 0], sizes = [8, 384], strides = [1, 1]} : vector<8x512xf32> to vector<8x384xf32>
    %140 = arith.negf %139 : vector<8x384xf32>
    %141 = math.exp %140 : vector<8x384xf32>
    %cst_42 = arith.constant 1.000000e+00 : f32
    %142 = vector.broadcast %cst_42 : f32 to vector<8x384xf32>
    %143 = arith.addf %142, %141 : vector<8x384xf32>
    %144 = arith.divf %142, %143 : vector<8x384xf32>
    %145 = vector.extract_strided_slice %144 {offsets = [0, 0], sizes = [8, 128], strides = [1, 1]} : vector<8x384xf32> to vector<8x128xf32>
    %146 = vector.extract_strided_slice %144 {offsets = [0, 128], sizes = [8, 128], strides = [1, 1]} : vector<8x384xf32> to vector<8x128xf32>
    %147 = vector.extract_strided_slice %144 {offsets = [0, 256], sizes = [8, 128], strides = [1, 1]} : vector<8x384xf32> to vector<8x128xf32>
    %148 = vector.extract_strided_slice %138 {offsets = [0, 384], sizes = [8, 128], strides = [1, 1]} : vector<8x512xf32> to vector<8x128xf32>
    %149 = math.tanh %148 : vector<8x128xf32>
    %150 = arith.mulf %146, %128 : vector<8x128xf32>
    %151 = arith.mulf %145, %149 : vector<8x128xf32>
    %152 = arith.addf %150, %151 : vector<8x128xf32>
    %153 = math.tanh %152 : vector<8x128xf32>
    %154 = arith.mulf %147, %153 : vector<8x128xf32>
    %155 = arith.index_cast %134 : i32 to index
    %c0_43 = arith.constant 0 : index
    %156 = vector.load %arg5[%155, %c0_43] : memref<64x128xf32, #tpu.memory_space<vmem>>, vector<8x128xf32>
    tpu.vector_store %arg5[%155, %c0_43], %154 {strides = array<i32>} : memref<64x128xf32, #tpu.memory_space<vmem>>, vector<8x128xf32>,
    %c6_i32 = arith.constant 6 : i32
    %c8_i32_44 = arith.constant 8 : i32
    %157 = arith.muli %c6_i32, %c8_i32_44 : i32
    %158 = tpu.assume_multiple %157, 8 : i32
    %159 = arith.index_cast %158 : i32 to index
    %c0_45 = arith.constant 0 : index
    %160 = vector.load %arg8[%159, %c0_45] : memref<64x512xf32, #tpu.memory_space<vmem>>, vector<8x512xf32>
    %cst_46 = arith.constant dense<0.000000e+00> : vector<8x512xf32>
    %161 = tpu.matmul %154, %10, %cst_46 {dimension_numbers = #tpu.dot_dimension_numbers<[1], [0], [0], [1], [0, 0, 1, 1], [], []>} : vector<8x128xf32>, vector<128x512xf32>, vector<8x512xf32> -> vector<8x512xf32>
    %162 = arith.addf %160, %161 : vector<8x512xf32>
    %163 = vector.extract_strided_slice %162 {offsets = [0, 0], sizes = [8, 384], strides = [1, 1]} : vector<8x512xf32> to vector<8x384xf32>
    %164 = arith.negf %163 : vector<8x384xf32>
    %165 = math.exp %164 : vector<8x384xf32>
    %cst_47 = arith.constant 1.000000e+00 : f32
    %166 = vector.broadcast %cst_47 : f32 to vector<8x384xf32>
    %167 = arith.addf %166, %165 : vector<8x384xf32>
    %168 = arith.divf %166, %167 : vector<8x384xf32>
    %169 = vector.extract_strided_slice %168 {offsets = [0, 0], sizes = [8, 128], strides = [1, 1]} : vector<8x384xf32> to vector<8x128xf32>
    %170 = vector.extract_strided_slice %168 {offsets = [0, 128], sizes = [8, 128], strides = [1, 1]} : vector<8x384xf32> to vector<8x128xf32>
    %171 = vector.extract_strided_slice %168 {offsets = [0, 256], sizes = [8, 128], strides = [1, 1]} : vector<8x384xf32> to vector<8x128xf32>
    %172 = vector.extract_strided_slice %162 {offsets = [0, 384], sizes = [8, 128], strides = [1, 1]} : vector<8x512xf32> to vector<8x128xf32>
    %173 = math.tanh %172 : vector<8x128xf32>
    %174 = arith.mulf %170, %152 : vector<8x128xf32>
    %175 = arith.mulf %169, %173 : vector<8x128xf32>
    %176 = arith.addf %174, %175 : vector<8x128xf32>
    %177 = math.tanh %176 : vector<8x128xf32>
    %178 = arith.mulf %171, %177 : vector<8x128xf32>
    %179 = arith.index_cast %158 : i32 to index
    %c0_48 = arith.constant 0 : index
    %180 = vector.load %arg5[%179, %c0_48] : memref<64x128xf32, #tpu.memory_space<vmem>>, vector<8x128xf32>
    tpu.vector_store %arg5[%179, %c0_48], %178 {strides = array<i32>} : memref<64x128xf32, #tpu.memory_space<vmem>>, vector<8x128xf32>,
    %c7_i32 = arith.constant 7 : i32
    %c8_i32_49 = arith.constant 8 : i32
    %181 = arith.muli %c7_i32, %c8_i32_49 : i32
    %182 = tpu.assume_multiple %181, 8 : i32
    %183 = arith.index_cast %182 : i32 to index
    %c0_50 = arith.constant 0 : index
    %184 = vector.load %arg8[%183, %c0_50] : memref<64x512xf32, #tpu.memory_space<vmem>>, vector<8x512xf32>
    %cst_51 = arith.constant dense<0.000000e+00> : vector<8x512xf32>
    %185 = tpu.matmul %178, %10, %cst_51 {dimension_numbers = #tpu.dot_dimension_numbers<[1], [0], [0], [1], [0, 0, 1, 1], [], []>} : vector<8x128xf32>, vector<128x512xf32>, vector<8x512xf32> -> vector<8x512xf32>
    %186 = arith.addf %184, %185 : vector<8x512xf32>
    %187 = vector.extract_strided_slice %186 {offsets = [0, 0], sizes = [8, 384], strides = [1, 1]} : vector<8x512xf32> to vector<8x384xf32>
    %188 = arith.negf %187 : vector<8x384xf32>
    %189 = math.exp %188 : vector<8x384xf32>
    %cst_52 = arith.constant 1.000000e+00 : f32
    %190 = vector.broadcast %cst_52 : f32 to vector<8x384xf32>
    %191 = arith.addf %190, %189 : vector<8x384xf32>
    %192 = arith.divf %190, %191 : vector<8x384xf32>
    %193 = vector.extract_strided_slice %192 {offsets = [0, 0], sizes = [8, 128], strides = [1, 1]} : vector<8x384xf32> to vector<8x128xf32>
    %194 = vector.extract_strided_slice %192 {offsets = [0, 128], sizes = [8, 128], strides = [1, 1]} : vector<8x384xf32> to vector<8x128xf32>
    %195 = vector.extract_strided_slice %192 {offsets = [0, 256], sizes = [8, 128], strides = [1, 1]} : vector<8x384xf32> to vector<8x128xf32>
    %196 = vector.extract_strided_slice %186 {offsets = [0, 384], sizes = [8, 128], strides = [1, 1]} : vector<8x512xf32> to vector<8x128xf32>
    %197 = math.tanh %196 : vector<8x128xf32>
    %198 = arith.mulf %194, %176 : vector<8x128xf32>
    %199 = arith.mulf %193, %197 : vector<8x128xf32>
    %200 = arith.addf %198, %199 : vector<8x128xf32>
    %201 = math.tanh %200 : vector<8x128xf32>
    %202 = arith.mulf %195, %201 : vector<8x128xf32>
    %203 = arith.index_cast %182 : i32 to index
    %c0_53 = arith.constant 0 : index
    %204 = vector.load %arg5[%203, %c0_53] : memref<64x128xf32, #tpu.memory_space<vmem>>, vector<8x128xf32>
    tpu.vector_store %arg5[%203, %c0_53], %202 {strides = array<i32>} : memref<64x128xf32, #tpu.memory_space<vmem>>, vector<8x128xf32>,
    %c8_i32_54 = arith.constant 8 : i32
    %c0_55 = arith.constant 0 : index
    %c0_56 = arith.constant 0 : index
    %205 = vector.load %arg6[%c0_55, %c0_56] : memref<8x128xf32, #tpu.memory_space<vmem>>, vector<8x128xf32>
    tpu.vector_store %arg6[%c0_55, %c0_56], %202 {strides = array<i32>} : memref<8x128xf32, #tpu.memory_space<vmem>>, vector<8x128xf32>,
    %c0_57 = arith.constant 0 : index
    %c0_58 = arith.constant 0 : index
    %206 = vector.load %arg7[%c0_57, %c0_58] : memref<8x128xf32, #tpu.memory_space<vmem>>, vector<8x128xf32>
    tpu.vector_store %arg7[%c0_57, %c0_58], %200 {strides = array<i32>} : memref<8x128xf32, #tpu.memory_space<vmem>>, vector<8x128xf32>,
    return
  }
  func.func @transform_0(%arg0: i32) -> (i32, i32) {
    %c0_i32 = arith.constant 0 : i32
    %c0_i32_0 = arith.constant 0 : i32
    return %arg0, %c0_i32 : i32, i32
  }
  func.func @transform_1(%arg0: i32) -> (i32, i32) {
    %c0_i32 = arith.constant 0 : i32
    %c0_i32_0 = arith.constant 0 : i32
    %c0_i32_1 = arith.constant 0 : i32
    return %c0_i32, %c0_i32_0 : i32, i32
  }
  func.func @transform_2(%arg0: i32) -> (i32, i32) {
    %c0_i32 = arith.constant 0 : i32
    %c0_i32_0 = arith.constant 0 : i32
    %c0_i32_1 = arith.constant 0 : i32
    return %c0_i32, %c0_i32_0 : i32, i32
  }
  func.func @transform_3(%arg0: i32) -> (i32, i32) {
    %c0_i32 = arith.constant 0 : i32
    %c0_i32_0 = arith.constant 0 : i32
    %c0_i32_1 = arith.constant 0 : i32
    return %c0_i32, %c0_i32_0 : i32, i32
  }
  func.func @transform_4(%arg0: i32) -> (i32, i32) {
    %c0_i32 = arith.constant 0 : i32
    %c0_i32_0 = arith.constant 0 : i32
    return %arg0, %c0_i32 : i32, i32
  }
}

</mosaic_0001>

<llo_original>
// kernel: tpu_custom_call.1
$region0: #{tpu_custom_call.1}
  #allocation0 [shape = 'u32[]', space=smem, size = 0x4, offset = 0x4, fixed_abs, tag = 'smem constant byte address 0x4 - core index']
  #allocation1 [shape = 'u32[72,128]{1,0:T(1,128)}', space=vmem, size = 0x9000, scoped, tag = 'internal scratch']
  #allocation2 [shape = 'f32[8,128]{1,0:T(8,128)}', space=vmem, size = 0x1000, scoped, tag = 'scratch operand']
  #allocation3 [shape = 'f32[8,128]{1,0:T(8,128)}', space=vmem, size = 0x1000, scoped, tag = 'scratch operand']
  #allocation4 [shape = 'f32[64,512]{1,0:T(8,128)}', space=vmem, size = 0x20000, scoped, tag = 'scratch operand']
  %s0 = inlined_call_operand.vmem [shape: f32[64,16], index: 0, kind: input, shape index: {}]
  %s1 = inlined_call_operand.vmem [shape: f32[16,512], index: 1, kind: input, shape index: {}]
  %s2 = inlined_call_operand.hbm [shape: f32[128,512], index: 2, kind: input, shape index: {}]
  %s3 = inlined_call_operand.vmem [shape: f32[1,512], index: 3, kind: input, shape index: {}]
  %s4 = inlined_call_operand.hbm [shape: f32[64,128], index: 4, kind: output, shape index: {}]
  %s5 = sld [smem:[#allocation0]]
  $region34: #{tpu_custom_call.1} parent=0
    _
  %s7 = ssub.s32 1, %s5
  %s8 = scalar_select 0, %s7, %s5
  $region1: #{tpu_custom_call.1} parent=0
    #allocation5 [shape = 'u8[262144]{0}', space=vmem, size = 0x40000, scoped, tag = 'input window, operand 2, single buffered']
    #allocation6 [shape = 's32[1]{0}', space=sflag, size = 0x4, scoped, tag = 'scoped memory for tpu_custom_call.1']
    #allocation7 [shape = 's32[1]{0}', space=sflag, size = 0x4, scoped, tag = 'scoped memory for tpu_custom_call.1']
    #allocation8 [shape = 'u8[32768]{0}', space=vmem, size = 0x8000, scoped, tag = 'output window, operand 0, single buffered']
    %9 = vsyncpa [#allocation6], 0
    %10 = vsyncpa [#allocation7], 0
    // Predicated region
    $region2: #{tpu_custom_call.1} parent=1 // pred_check
      _
    $region3: #{tpu_custom_call.1} parent=1 // pred_check_branch
      %12 = sbr.rel (0) target = $region5
    $region4: #{tpu_custom_call.1} parent=1 // pred_region
      _
    $region5: #{tpu_custom_call.1} parent=1 // pred_fallthru
      _
    // Predicated region
    $region6: #{tpu_custom_call.1} parent=1 // pred_check
      _
    $region7: #{tpu_custom_call.1} parent=1 // pred_check_branch
      %14 = sbr.rel (0) target = $region9
    $region8: #{tpu_custom_call.1} parent=1 // pred_region
      _
    $region9: #{tpu_custom_call.1} parent=1 // pred_fallthru
      _
    // Predicated region
    $region10: #{tpu_custom_call.1} parent=1 // pred_check
      _
    $region11: #{tpu_custom_call.1} parent=1 // pred_check_branch
      %16 = sbr.rel (0) target = $region13
    $region12: #{tpu_custom_call.1} parent=1 // pred_region
      %18 = vsyncadd [#allocation6], 0
      %s19 = sshll.u32 %s2, 4
      %s20 = int_to_ptr.hbm [resolvable:$true] %s19
      %s21 = sshll.u32 [#allocation5], 4
      %s22 = int_to_ptr.vmem [resolvable:$true] %s21
      %27 = dma.hbm_to_vmem [thread:$0]  %s20, 8192, %s22, [#allocation6], 512, 512, 32
    $region13: #{tpu_custom_call.1} parent=1 // pred_fallthru
      _
    // Predicated region
    $region14: #{tpu_custom_call.1} parent=1 // pred_check
      _
    $region15: #{tpu_custom_call.1} parent=1 // pred_check_branch
      %29 = sbr.rel (0) target = $region17
    $region16: #{tpu_custom_call.1} parent=1 // pred_region
      _
    $region17: #{tpu_custom_call.1} parent=1 // pred_fallthru
      _
    // Predicated region
    $region18: #{tpu_custom_call.1} parent=1 // pred_check
      _
    $region19: #{tpu_custom_call.1} parent=1 // pred_check_branch
      %31 = sbr.rel (0) target = $region21
    $region20: #{tpu_custom_call.1} parent=1 // pred_region
      %33 = dma.done [#allocation6], 8192
    $region21: #{tpu_custom_call.1} parent=1 // pred_fallthru
      _
    %p34 = scmp.eq.s32.totalorder 0, 0
    // Predicated region
    $region22: #{tpu_custom_call.1} parent=1 // pred_check
      %p35 = pneg %p34
    $region23: #{tpu_custom_call.1} parent=1 // pred_check_branch
      %37 = sbr.rel (%p35) target = $region25
    $region24: #{tpu_custom_call.1} parent=1 // pred_region
      %38 = vst [vmem:[#allocation2] sm:$0xff] 0.0
      %39 = vst [vmem:[#allocation3] sm:$0xff] 0.0
    $region25: #{tpu_custom_call.1} parent=1 // pred_fallthru
      _
    %v40 = vld [vmem:[%s0] sm:$0xff]
    %v41 = vld [vmem:[%s0 + $0x8] sm:$0xff]
    %v42 = vld [vmem:[%s0 + $0x10] sm:$0xff]
    %v43 = vld [vmem:[%s0 + $0x18] sm:$0xff]
    %v44 = vld [vmem:[%s0 + $0x20] sm:$0xff]
    %v45 = vld [vmem:[%s0 + $0x28] sm:$0xff]
    %v46 = vld [vmem:[%s0 + $0x30] sm:$0xff]
    %v47 = vld [vmem:[%s0 + $0x38] sm:$0xff]
    %v48 = vld [vmem:[%s1] sm:$0xff]
    %v49 = vld [vmem:[%s1 + $0x8] sm:$0xff]
    %v50 = vld [vmem:[%s1 + $0x10] sm:$0xff]
    %v51 = vld [vmem:[%s1 + $0x18] sm:$0xff]
    %v52 = vld [vmem:[%s1 + $0x20] sm:$0xff]
    %v53 = vld [vmem:[%s1 + $0x28] sm:$0xff]
    %v54 = vld [vmem:[%s1 + $0x30] sm:$0xff]
    %v55 = vld [vmem:[%s1 + $0x38] sm:$0xff]
    %v56 = vld [vmem:[%s3] sm:$0xf]
    %v58 = vperm.slane %v56, 0
    %v59 = vperm.slane %v56, 1
    %v60 = vperm.slane %v56, 2
    %v61 = vperm.slane %v56, 3
    %vm66 = vcmask 130048
    %v68 = vsel %vm66, %v40, 0
    %v71 = vsel %vm66, %v41, 0
    %v74 = vsel %vm66, %v42, 0
    %v77 = vsel %vm66, %v43, 0
    %v80 = vsel %vm66, %v44, 0
    %v83 = vsel %vm66, %v45, 0
    %v86 = vsel %vm66, %v46, 0
    %v89 = vsel %vm66, %v47, 0
    %91 = vmatpush.msra.mxu0 0.0
    %92 = vmatpush.msra.mxu0 0.0
    %93 = vmatpush.msra.mxu0 0.0
    %94 = vmatpush.msra.mxu0 0.0
    %95 = vmatpush.msra.mxu0 0.0
    %96 = vmatpush.msra.mxu0 0.0
    %97 = vmatpush.msra.mxu0 0.0
    %98 = vmatpush.msra.mxu0 0.0
    %99 = vmatpush.msra.mxu0 0.0
    %100 = vmatpush.msra.mxu0 0.0
    %101 = vmatpush.msra.mxu0 0.0
    %102 = vmatpush.msra.mxu0 0.0
    %103 = vmatpush.msra.mxu0 0.0
    %104 = vmatpush.msra.mxu0 0.0
    %105 = vmatpush.msra.mxu0 %v52
    %106 = vmatpush.msra.mxu0 %v48
    %107 = vmatmul.f32.gmra.mxu0 %v68
    %v108 = vpop.f32.mrf.mxu0
    %v109 = vadd.f32 %v58, %v108
    %110 = vmatmul.f32.gmra.mxu0 %v71
    %v111 = vpop.f32.mrf.mxu0
    %v112 = vadd.f32 %v58, %v111
    %113 = vmatmul.f32.gmra.mxu0 %v74
    %v114 = vpop.f32.mrf.mxu0
    %v115 = vadd.f32 %v58, %v114
    %116 = vmatmul.f32.gmra.mxu0 %v77
    %v117 = vpop.f32.mrf.mxu0
    %v118 = vadd.f32 %v58, %v117
    %119 = vmatmul.f32.gmra.mxu0 %v80
    %v120 = vpop.f32.mrf.mxu0
    %v121 = vadd.f32 %v58, %v120
    %122 = vmatmul.f32.gmra.mxu0 %v83
    %v123 = vpop.f32.mrf.mxu0
    %v124 = vadd.f32 %v58, %v123
    %125 = vmatmul.f32.gmra.mxu0 %v86
    %v126 = vpop.f32.mrf.mxu0
    %v127 = vadd.f32 %v58, %v126
    %128 = vmatmul.f32.gmra.mxu0 %v89
    %v129 = vpop.f32.mrf.mxu0
    %v130 = vadd.f32 %v58, %v129
    %131 = vdwg.mxu0
    %132 = vmatpush.msra.mxu0 0.0
    %133 = vmatpush.msra.mxu0 0.0
    %134 = vmatpush.msra.mxu0 0.0
    %135 = vmatpush.msra.mxu0 0.0
    %136 = vmatpush.msra.mxu0 0.0
    %137 = vmatpush.msra.mxu0 0.0
    %138 = vmatpush.msra.mxu0 0.0
    %139 = vmatpush.msra.mxu0 0.0
    %140 = vmatpush.msra.mxu0 0.0
    %141 = vmatpush.msra.mxu0 0.0
    %142 = vmatpush.msra.mxu0 0.0
    %143 = vmatpush.msra.mxu0 0.0
    %144 = vmatpush.msra.mxu0 0.0
    %145 = vmatpush.msra.mxu0 0.0
    %146 = vmatpush.msra.mxu0 %v53
    %147 = vmatpush.msra.mxu0 %v49
    %148 = vmatmul.f32.gmra.mxu0 %v68
    %v149 = vpop.f32.mrf.mxu0
    %v150 = vadd.f32 %v59, %v149
    %151 = vmatmul.f32.gmra.mxu0 %v71
    %v152 = vpop.f32.mrf.mxu0
    %v153 = vadd.f32 %v59, %v152
    %154 = vmatmul.f32.gmra.mxu0 %v74
    %v155 = vpop.f32.mrf.mxu0
    %v156 = vadd.f32 %v59, %v155
    %157 = vmatmul.f32.gmra.mxu0 %v77
    %v158 = vpop.f32.mrf.mxu0
    %v159 = vadd.f32 %v59, %v158
    %160 = vmatmul.f32.gmra.mxu0 %v80
    %v161 = vpop.f32.mrf.mxu0
    %v162 = vadd.f32 %v59, %v161
    %163 = vmatmul.f32.gmra.mxu0 %v83
    %v164 = vpop.f32.mrf.mxu0
    %v165 = vadd.f32 %v59, %v164
    %166 = vmatmul.f32.gmra.mxu0 %v86
    %v167 = vpop.f32.mrf.mxu0
    %v168 = vadd.f32 %v59, %v167
    %169 = vmatmul.f32.gmra.mxu0 %v89
    %v170 = vpop.f32.mrf.mxu0
    %v171 = vadd.f32 %v59, %v170
    %172 = vdwg.mxu0
    %173 = vmatpush.msra.mxu0 0.0
    %174 = vmatpush.msra.mxu0 0.0
    %175 = vmatpush.msra.mxu0 0.0
    %176 = vmatpush.msra.mxu0 0.0
    %177 = vmatpush.msra.mxu0 0.0
    %178 = vmatpush.msra.mxu0 0.0
    %179 = vmatpush.msra.mxu0 0.0
    %180 = vmatpush.msra.mxu0 0.0
    %181 = vmatpush.msra.mxu0 0.0
    %182 = vmatpush.msra.mxu0 0.0
    %183 = vmatpush.msra.mxu0 0.0
    %184 = vmatpush.msra.mxu0 0.0
    %185 = vmatpush.msra.mxu0 0.0
    %186 = vmatpush.msra.mxu0 0.0
    %187 = vmatpush.msra.mxu0 %v54
    %188 = vmatpush.msra.mxu0 %v50
    %189 = vmatmul.f32.gmra.mxu0 %v68
    %v190 = vpop.f32.mrf.mxu0
    %v191 = vadd.f32 %v60, %v190
    %192 = vmatmul.f32.gmra.mxu0 %v71
    %v193 = vpop.f32.mrf.mxu0
    %v194 = vadd.f32 %v60, %v193
    %195 = vmatmul.f32.gmra.mxu0 %v74
    %v196 = vpop.f32.mrf.mxu0
    %v197 = vadd.f32 %v60, %v196
    %198 = vmatmul.f32.gmra.mxu0 %v77
    %v199 = vpop.f32.mrf.mxu0
    %v200 = vadd.f32 %v60, %v199
    %201 = vmatmul.f32.gmra.mxu0 %v80
    %v202 = vpop.f32.mrf.mxu0
    %v203 = vadd.f32 %v60, %v202
    %204 = vmatmul.f32.gmra.mxu0 %v83
    %v205 = vpop.f32.mrf.mxu0
    %v206 = vadd.f32 %v60, %v205
    %207 = vmatmul.f32.gmra.mxu0 %v86
    %v208 = vpop.f32.mrf.mxu0
    %v209 = vadd.f32 %v60, %v208
    %210 = vmatmul.f32.gmra.mxu0 %v89
    %v211 = vpop.f32.mrf.mxu0
    %v212 = vadd.f32 %v60, %v211
    %213 = vdwg.mxu0
    %214 = vmatpush.msra.mxu0 0.0
    %215 = vmatpush.msra.mxu0 0.0
    %216 = vmatpush.msra.mxu0 0.0
    %217 = vmatpush.msra.mxu0 0.0
    %218 = vmatpush.msra.mxu0 0.0
    %219 = vmatpush.msra.mxu0 0.0
    %220 = vmatpush.msra.mxu0 0.0
    %221 = vmatpush.msra.mxu0 0.0
    %222 = vmatpush.msra.mxu0 0.0
    %223 = vmatpush.msra.mxu0 0.0
    %224 = vmatpush.msra.mxu0 0.0
    %225 = vmatpush.msra.mxu0 0.0
    %226 = vmatpush.msra.mxu0 0.0
    %227 = vmatpush.msra.mxu0 0.0
    %228 = vmatpush.msra.mxu0 %v55
    %229 = vmatpush.msra.mxu0 %v51
    %230 = vmatmul.f32.gmra.mxu0 %v68
    %v231 = vpop.f32.mrf.mxu0
    %v232 = vadd.f32 %v61, %v231
    %233 = vmatmul.f32.gmra.mxu0 %v71
    %v234 = vpop.f32.mrf.mxu0
    %v235 = vadd.f32 %v61, %v234
    %236 = vmatmul.f32.gmra.mxu0 %v74
    %v237 = vpop.f32.mrf.mxu0
    %v238 = vadd.f32 %v61, %v237
    %239 = vmatmul.f32.gmra.mxu0 %v77
    %v240 = vpop.f32.mrf.mxu0
    %v241 = vadd.f32 %v61, %v240
    %242 = vmatmul.f32.gmra.mxu0 %v80
    %v243 = vpop.f32.mrf.mxu0
    %v244 = vadd.f32 %v61, %v243
    %245 = vmatmul.f32.gmra.mxu0 %v83
    %v246 = vpop.f32.mrf.mxu0
    %v247 = vadd.f32 %v61, %v246
    %248 = vmatmul.f32.gmra.mxu0 %v86
    %v249 = vpop.f32.mrf.mxu0
    %v250 = vadd.f32 %v61, %v249
    %251 = vmatmul.f32.gmra.mxu0 %v89
    %v252 = vpop.f32.mrf.mxu0
    %v253 = vadd.f32 %v61, %v252
    %254 = vdwg.mxu0
    %255 = vst [vmem:[#allocation4] sm:$0xff] %v109
    %256 = vst [vmem:[#allocation4 + $0x8] sm:$0xff] %v150
    %257 = vst [vmem:[#allocation4 + $0x10] sm:$0xff] %v191
    %258 = vst [vmem:[#allocation4 + $0x18] sm:$0xff] %v232
    %259 = vst [vmem:[#allocation4 + $0x20] sm:$0xff] %v112
    %260 = vst [vmem:[#allocation4 + $0x28] sm:$0xff] %v153
    %261 = vst [vmem:[#allocation4 + $0x30] sm:$0xff] %v194
    %262 = vst [vmem:[#allocation4 + $0x38] sm:$0xff] %v235
    %263 = vst [vmem:[#allocation4 + $0x40] sm:$0xff] %v115
    %264 = vst [vmem:[#allocation4 + $0x48] sm:$0xff] %v156
    %265 = vst [vmem:[#allocation4 + $0x50] sm:$0xff] %v197
    %266 = vst [vmem:[#allocation4 + $0x58] sm:$0xff] %v238
    %267 = vst [vmem:[#allocation4 + $0x60] sm:$0xff] %v118
    %268 = vst [vmem:[#allocation4 + $0x68] sm:$0xff] %v159
    %269 = vst [vmem:[#allocation4 + $0x70] sm:$0xff] %v200
    %270 = vst [vmem:[#allocation4 + $0x78] sm:$0xff] %v241
    %271 = vst [vmem:[#allocation4 + $0x80] sm:$0xff] %v121
    %272 = vst [vmem:[#allocation4 + $0x88] sm:$0xff] %v162
    %273 = vst [vmem:[#allocation4 + $0x90] sm:$0xff] %v203
    %274 = vst [vmem:[#allocation4 + $0x98] sm:$0xff] %v244
    %275 = vst [vmem:[#allocation4 + $0xa0] sm:$0xff] %v124
    %276 = vst [vmem:[#allocation4 + $0xa8] sm:$0xff] %v165
    %277 = vst [vmem:[#allocation4 + $0xb0] sm:$0xff] %v206
    %278 = vst [vmem:[#allocation4 + $0xb8] sm:$0xff] %v247
    %279 = vst [vmem:[#allocation4 + $0xc0] sm:$0xff] %v127
    %280 = vst [vmem:[#allocation4 + $0xc8] sm:$0xff] %v168
    %281 = vst [vmem:[#allocation4 + $0xd0] sm:$0xff] %v209
    %282 = vst [vmem:[#allocation4 + $0xd8] sm:$0xff] %v250
    %283 = vst [vmem:[#allocation4 + $0xe0] sm:$0xff] %v130
    %284 = vst [vmem:[#allocation4 + $0xe8] sm:$0xff] %v171
    %285 = vst [vmem:[#allocation4 + $0xf0] sm:$0xff] %v212
    %286 = vst [vmem:[#allocation4 + $0xf8] sm:$0xff] %v253
    %v287 = vld [vmem:[#allocation5] sm:$0xff]
    %v288 = vld [vmem:[#allocation5 + $0x8] sm:$0xff]
    %v289 = vld [vmem:[#allocation5 + $0x10] sm:$0xff]
    %v290 = vld [vmem:[#allocation5 + $0x18] sm:$0xff]
    %v291 = vld [vmem:[#allocation5 + $0x20] sm:$0xff]
    %v292 = vld [vmem:[#allocation5 + $0x28] sm:$0xff]
    %v293 = vld [vmem:[#allocation5 + $0x30] sm:$0xff]
    %v294 = vld [vmem:[#allocation5 + $0x38] sm:$0xff]
    %v295 = vld [vmem:[#allocation5 + $0x40] sm:$0xff]
    %v296 = vld [vmem:[#allocation5 + $0x48] sm:$0xff]
    %v297 = vld [vmem:[#allocation5 + $0x50] sm:$0xff]
    %v298 = vld [vmem:[#allocation5 + $0x58] sm:$0xff]
    %v299 = vld [vmem:[#allocation5 + $0x60] sm:$0xff]
    %v300 = vld [vmem:[#allocation5 + $0x68] sm:$0xff]
    %v301 = vld [vmem:[#allocation5 + $0x70] sm:$0xff]
    %v302 = vld [vmem:[#allocation5 + $0x78] sm:$0xff]
    %v303 = vld [vmem:[#allocation5 + $0x80] sm:$0xff]
    %v304 = vld [vmem:[#allocation5 + $0x88] sm:$0xff]
    %v305 = vld [vmem:[#allocation5 + $0x90] sm:$0xff]
    %v306 = vld [vmem:[#allocation5 + $0x98] sm:$0xff]
    %v307 = vld [vmem:[#allocation5 + $0xa0] sm:$0xff]
    %v308 = vld [vmem:[#allocation5 + $0xa8] sm:$0xff]
    %v309 = vld [vmem:[#allocation5 + $0xb0] sm:$0xff]
    %v310 = vld [vmem:[#allocation5 + $0xb8] sm:$0xff]
    %v311 = vld [vmem:[#allocation5 + $0xc0] sm:$0xff]
    %v312 = vld [vmem:[#allocation5 + $0xc8] sm:$0xff]
    %v313 = vld [vmem:[#allocation5 + $0xd0] sm:$0xff]
    %v314 = vld [vmem:[#allocation5 + $0xd8] sm:$0xff]
    %v315 = vld [vmem:[#allocation5 + $0xe0] sm:$0xff]
    %v316 = vld [vmem:[#allocation5 + $0xe8] sm:$0xff]
    %v317 = vld [vmem:[#allocation5 + $0xf0] sm:$0xff]
    %v318 = vld [vmem:[#allocation5 + $0xf8] sm:$0xff]
    %v319 = vld [vmem:[#allocation5 + $0x100] sm:$0xff]
    %v320 = vld [vmem:[#allocation5 + $0x108] sm:$0xff]
    %v321 = vld [vmem:[#allocation5 + $0x110] sm:$0xff]
    %v322 = vld [vmem:[#allocation5 + $0x118] sm:$0xff]
    %v323 = vld [vmem:[#allocation5 + $0x120] sm:$0xff]
    %v324 = vld [vmem:[#allocation5 + $0x128] sm:$0xff]
    %v325 = vld [vmem:[#allocation5 + $0x130] sm:$0xff]
    %v326 = vld [vmem:[#allocation5 + $0x138] sm:$0xff]
    %v327 = vld [vmem:[#allocation5 + $0x140] sm:$0xff]
    %v328 = vld [vmem:[#allocation5 + $0x148] sm:$0xff]
    %v329 = vld [vmem:[#allocation5 + $0x150] sm:$0xff]
    %v330 = vld [vmem:[#allocation5 + $0x158] sm:$0xff]
    %v331 = vld [vmem:[#allocation5 + $0x160] sm:$0xff]
    %v332 = vld [vmem:[#allocation5 + $0x168] sm:$0xff]
    %v333 = vld [vmem:[#allocation5 + $0x170] sm:$0xff]
    %v334 = vld [vmem:[#allocation5 + $0x178] sm:$0xff]
    %v335 = vld [vmem:[#allocation5 + $0x180] sm:$0xff]
    %v336 = vld [vmem:[#allocation5 + $0x188] sm:$0xff]
    %v337 = vld [vmem:[#allocation5 + $0x190] sm:$0xff]
    %v338 = vld [vmem:[#allocation5 + $0x198] sm:$0xff]
    %v339 = vld [vmem:[#allocation5 + $0x1a0] sm:$0xff]
    %v340 = vld [vmem:[#allocation5 + $0x1a8] sm:$0xff]
    %v341 = vld [vmem:[#allocation5 + $0x1b0] sm:$0xff]
    %v342 = vld [vmem:[#allocation5 + $0x1b8] sm:$0xff]
    %v343 = vld [vmem:[#allocation5 + $0x1c0] sm:$0xff]
    %v344 = vld [vmem:[#allocation5 + $0x1c8] sm:$0xff]
    %v345 = vld [vmem:[#allocation5 + $0x1d0] sm:$0xff]
    %v346 = vld [vmem:[#allocation5 + $0x1d8] sm:$0xff]
    %v347 = vld [vmem:[#allocation5 + $0x1e0] sm:$0xff]
    %v348 = vld [vmem:[#allocation5 + $0x1e8] sm:$0xff]
    %v349 = vld [vmem:[#allocation5 + $0x1f0] sm:$0xff]
    %v350 = vld [vmem:[#allocation5 + $0x1f8] sm:$0xff]
    %v351 = vld [vmem:[#allocation2] sm:$0xff]
    %v352 = vld [vmem:[#allocation3] sm:$0xff]
    %s353 = smul.u32 0, 4
    %s354 = smul.addr %s353, 8
    %s355 = scalar_lea.vmem [#allocation4], %s354
    %v356 = vld [vmem:[%s355] sm:$0xff]
    %v357 = vld [vmem:[%s355 + $0x8] sm:$0xff]
    %v358 = vld [vmem:[%s355 + $0x10] sm:$0xff]
    %v359 = vld [vmem:[%s355 + $0x18] sm:$0xff]
    %360 = vmatpush.msra.mxu0 %v347
    %361 = vmatpush.msra.mxu0 %v343
    %362 = vmatpush.msra.mxu0 %v339
    %363 = vmatpush.msra.mxu0 %v335
    %364 = vmatpush.msra.mxu0 %v331
    %365 = vmatpush.msra.mxu0 %v327
    %366 = vmatpush.msra.mxu0 %v323
    %367 = vmatpush.msra.mxu0 %v319
    %368 = vmatpush.msra.mxu0 %v315
    %369 = vmatpush.msra.mxu0 %v311
    %370 = vmatpush.msra.mxu0 %v307
    %371 = vmatpush.msra.mxu0 %v303
    %372 = vmatpush.msra.mxu0 %v299
    %373 = vmatpush.msra.mxu0 %v295
    %374 = vmatpush.msra.mxu0 %v291
    %375 = vmatpush.msra.mxu0 %v287
    %376 = vmatmul.f32.gmra.mxu0 %v351
    %v377 = vpop.f32.mrf.mxu0
    %v378 = vadd.f32 0.0, %v377
    %379 = vdwg.mxu0
    %380 = vmatpush.msra.mxu0 %v348
    %381 = vmatpush.msra.mxu0 %v344
    %382 = vmatpush.msra.mxu0 %v340
    %383 = vmatpush.msra.mxu0 %v336
    %384 = vmatpush.msra.mxu0 %v332
    %385 = vmatpush.msra.mxu0 %v328
    %386 = vmatpush.msra.mxu0 %v324
    %387 = vmatpush.msra.mxu0 %v320
    %388 = vmatpush.msra.mxu0 %v316
    %389 = vmatpush.msra.mxu0 %v312
    %390 = vmatpush.msra.mxu0 %v308
    %391 = vmatpush.msra.mxu0 %v304
    %392 = vmatpush.msra.mxu0 %v300
    %393 = vmatpush.msra.mxu0 %v296
    %394 = vmatpush.msra.mxu0 %v292
    %395 = vmatpush.msra.mxu0 %v288
    %396 = vmatmul.f32.gmra.mxu0 %v351
    %v397 = vpop.f32.mrf.mxu0
    %v398 = vadd.f32 0.0, %v397
    %399 = vdwg.mxu0
    %400 = vmatpush.msra.mxu0 %v349
    %401 = vmatpush.msra.mxu0 %v345
    %402 = vmatpush.msra.mxu0 %v341
    %403 = vmatpush.msra.mxu0 %v337
    %404 = vmatpush.msra.mxu0 %v333
    %405 = vmatpush.msra.mxu0 %v329
    %406 = vmatpush.msra.mxu0 %v325
    %407 = vmatpush.msra.mxu0 %v321
    %408 = vmatpush.msra.mxu0 %v317
    %409 = vmatpush.msra.mxu0 %v313
    %410 = vmatpush.msra.mxu0 %v309
    %411 = vmatpush.msra.mxu0 %v305
    %412 = vmatpush.msra.mxu0 %v301
    %413 = vmatpush.msra.mxu0 %v297
    %414 = vmatpush.msra.mxu0 %v293
    %415 = vmatpush.msra.mxu0 %v289
    %416 = vmatmul.f32.gmra.mxu0 %v351
    %v417 = vpop.f32.mrf.mxu0
    %v418 = vadd.f32 0.0, %v417
    %419 = vdwg.mxu0
    %420 = vmatpush.msra.mxu0 %v350
    %421 = vmatpush.msra.mxu0 %v346
    %422 = vmatpush.msra.mxu0 %v342
    %423 = vmatpush.msra.mxu0 %v338
    %424 = vmatpush.msra.mxu0 %v334
    %425 = vmatpush.msra.mxu0 %v330
    %426 = vmatpush.msra.mxu0 %v326
    %427 = vmatpush.msra.mxu0 %v322
    %428 = vmatpush.msra.mxu0 %v318
    %429 = vmatpush.msra.mxu0 %v314
    %430 = vmatpush.msra.mxu0 %v310
    %431 = vmatpush.msra.mxu0 %v306
    %432 = vmatpush.msra.mxu0 %v302
    %433 = vmatpush.msra.mxu0 %v298
    %434 = vmatpush.msra.mxu0 %v294
    %435 = vmatpush.msra.mxu0 %v290
    %436 = vmatmul.f32.gmra.mxu0 %v351
    %v437 = vpop.f32.mrf.mxu0
    %v438 = vadd.f32 0.0, %v437
    %439 = vdwg.mxu0
    %v440 = vadd.f32 %v356, %v378
    %v441 = vadd.f32 %v357, %v398
    %v442 = vadd.f32 %v358, %v418
    %v443 = vadd.f32 %v359, %v438
    %v444 = vxor.u32 %v440, 2147483648
    %v445 = vxor.u32 %v441, 2147483648
    %v446 = vxor.u32 %v442, 2147483648
    %v447 = vmul.f32 %v444, 1.442695
    %v448 = vpow.pop %v447
    %v449 = vmul.f32 %v445, 1.442695
    %v450 = vpow.pop %v449
    %v451 = vmul.f32 %v446, 1.442695
    %v452 = vpow.pop %v451
    %v453 = vadd.f32 %v448, 1.0
    %v454 = vadd.f32 %v450, 1.0
    %v455 = vadd.f32 %v452, 1.0
    %v456 = vrcp.pop %v453
    %v457 = vmul.f32 %v453, %v456
    %v458 = vsub.f32 1.0, %v457
    %v459 = vmul.f32 %v456, %v458
    %v460 = vadd.f32 %v456, %v459
    %vm461 = vweird.f32 %v453
    %vm462 = vweird.f32 %v456
    %vm463 = vmor %vm461, %vm462
    %v464 = vsel %vm463, %v456, %v460
    %v465 = vand.u32 2147483647, %v453
    %vm466 = vcmp.eq.f32.partialorder %v465, 8.507059e+37
    %v467 = vand.u32 %v453, 2147483648
    %v468 = vor.u32 1.1754944e-38, %v467
    %v469 = vsel %vm466, %v468, %v464
    %v470 = vmul.f32 1.0, %v469
    %v471 = vrcp.pop %v454
    %v472 = vmul.f32 %v454, %v471
    %v473 = vsub.f32 1.0, %v472
    %v474 = vmul.f32 %v471, %v473
    %v475 = vadd.f32 %v471, %v474
    %vm476 = vweird.f32 %v454
    %vm477 = vweird.f32 %v471
    %vm478 = vmor %vm476, %vm477
    %v479 = vsel %vm478, %v471, %v475
    %v480 = vand.u32 2147483647, %v454
    %vm481 = vcmp.eq.f32.partialorder %v480, 8.507059e+37
    %v482 = vand.u32 %v454, 2147483648
    %v483 = vor.u32 1.1754944e-38, %v482
    %v484 = vsel %vm481, %v483, %v479
    %v485 = vmul.f32 1.0, %v484
    %v486 = vrcp.pop %v455
    %v487 = vmul.f32 %v455, %v486
    %v488 = vsub.f32 1.0, %v487
    %v489 = vmul.f32 %v486, %v488
    %v490 = vadd.f32 %v486, %v489
    %vm491 = vweird.f32 %v455
    %vm492 = vweird.f32 %v486
    %vm493 = vmor %vm491, %vm492
    %v494 = vsel %vm493, %v486, %v490
    %v495 = vand.u32 2147483647, %v455
    %vm496 = vcmp.eq.f32.partialorder %v495, 8.507059e+37
    %v497 = vand.u32 %v455, 2147483648
    %v498 = vor.u32 1.1754944e-38, %v497
    %v499 = vsel %vm496, %v498, %v494
    %v500 = vmul.f32 1.0, %v499
    %v501 = vtanh.pop %v443
    %v502 = vmul.f32 %v485, %v352
    %v503 = vmul.f32 %v470, %v501
    %v504 = vadd.f32 %v502, %v503
    %v505 = vtanh.pop %v504
    %v506 = vmul.f32 %v500, %v505
    %507 = vst [vmem:[#allocation8] sm:$0xff] %v506
    %s508 = smul.u32 1, 4
    %s509 = smul.addr %s508, 8
    %s510 = scalar_lea.vmem [#allocation4], %s509
    %v511 = vld [vmem:[%s510] sm:$0xff]
    %v512 = vld [vmem:[%s510 + $0x8] sm:$0xff]
    %v513 = vld [vmem:[%s510 + $0x10] sm:$0xff]
    %v514 = vld [vmem:[%s510 + $0x18] sm:$0xff]
    %515 = vmatpush.msra.mxu0 %v347
    %516 = vmatpush.msra.mxu0 %v343
    %517 = vmatpush.msra.mxu0 %v339
    %518 = vmatpush.msra.mxu0 %v335
    %519 = vmatpush.msra.mxu0 %v331
    %520 = vmatpush.msra.mxu0 %v327
    %521 = vmatpush.msra.mxu0 %v323
    %522 = vmatpush.msra.mxu0 %v319
    %523 = vmatpush.msra.mxu0 %v315
    %524 = vmatpush.msra.mxu0 %v311
    %525 = vmatpush.msra.mxu0 %v307
    %526 = vmatpush.msra.mxu0 %v303
    %527 = vmatpush.msra.mxu0 %v299
    %528 = vmatpush.msra.mxu0 %v295
    %529 = vmatpush.msra.mxu0 %v291
    %530 = vmatpush.msra.mxu0 %v287
    %531 = vmatmul.f32.gmra.mxu0 %v506
    %v532 = vpop.f32.mrf.mxu0
    %v533 = vadd.f32 0.0, %v532
    %534 = vdwg.mxu0
    %535 = vmatpush.msra.mxu0 %v348
    %536 = vmatpush.msra.mxu0 %v344
    %537 = vmatpush.msra.mxu0 %v340
    %538 = vmatpush.msra.mxu0 %v336
    %539 = vmatpush.msra.mxu0 %v332
    %540 = vmatpush.msra.mxu0 %v328
    %541 = vmatpush.msra.mxu0 %v324
    %542 = vmatpush.msra.mxu0 %v320
    %543 = vmatpush.msra.mxu0 %v316
    %544 = vmatpush.msra.mxu0 %v312
    %545 = vmatpush.msra.mxu0 %v308
    %546 = vmatpush.msra.mxu0 %v304
    %547 = vmatpush.msra.mxu0 %v300
    %548 = vmatpush.msra.mxu0 %v296
    %549 = vmatpush.msra.mxu0 %v292
    %550 = vmatpush.msra.mxu0 %v288
    %551 = vmatmul.f32.gmra.mxu0 %v506
    %v552 = vpop.f32.mrf.mxu0
    %v553 = vadd.f32 0.0, %v552
    %554 = vdwg.mxu0
    %555 = vmatpush.msra.mxu0 %v349
    %556 = vmatpush.msra.mxu0 %v345
    %557 = vmatpush.msra.mxu0 %v341
    %558 = vmatpush.msra.mxu0 %v337
    %559 = vmatpush.msra.mxu0 %v333
    %560 = vmatpush.msra.mxu0 %v329
    %561 = vmatpush.msra.mxu0 %v325
    %562 = vmatpush.msra.mxu0 %v321
    %563 = vmatpush.msra.mxu0 %v317
    %564 = vmatpush.msra.mxu0 %v313
    %565 = vmatpush.msra.mxu0 %v309
    %566 = vmatpush.msra.mxu0 %v305
    %567 = vmatpush.msra.mxu0 %v301
    %568 = vmatpush.msra.mxu0 %v297
    %569 = vmatpush.msra.mxu0 %v293
    %570 = vmatpush.msra.mxu0 %v289
    %571 = vmatmul.f32.gmra.mxu0 %v506
    %v572 = vpop.f32.mrf.mxu0
    %v573 = vadd.f32 0.0, %v572
    %574 = vdwg.mxu0
    %575 = vmatpush.msra.mxu0 %v350
    %576 = vmatpush.msra.mxu0 %v346
    %577 = vmatpush.msra.mxu0 %v342
    %578 = vmatpush.msra.mxu0 %v338
    %579 = vmatpush.msra.mxu0 %v334
    %580 = vmatpush.msra.mxu0 %v330
    %581 = vmatpush.msra.mxu0 %v326
    %582 = vmatpush.msra.mxu0 %v322
    %583 = vmatpush.msra.mxu0 %v318
    %584 = vmatpush.msra.mxu0 %v314
    %585 = vmatpush.msra.mxu0 %v310
    %586 = vmatpush.msra.mxu0 %v306
    %587 = vmatpush.msra.mxu0 %v302
    %588 = vmatpush.msra.mxu0 %v298
    %589 = vmatpush.msra.mxu0 %v294
    %590 = vmatpush.msra.mxu0 %v290
    %591 = vmatmul.f32.gmra.mxu0 %v506
    %v592 = vpop.f32.mrf.mxu0
    %v593 = vadd.f32 0.0, %v592
    %594 = vdwg.mxu0
    %v595 = vadd.f32 %v511, %v533
    %v596 = vadd.f32 %v512, %v553
    %v597 = vadd.f32 %v513, %v573
    %v598 = vadd.f32 %v514, %v593
    %v599 = vxor.u32 %v595, 2147483648
    %v600 = vxor.u32 %v596, 2147483648
    %v601 = vxor.u32 %v597, 2147483648
    %v602 = vmul.f32 %v599, 1.442695
    %v603 = vpow.pop %v602
    %v604 = vmul.f32 %v600, 1.442695
    %v605 = vpow.pop %v604
    %v606 = vmul.f32 %v601, 1.442695
    %v607 = vpow.pop %v606
    %v608 = vadd.f32 %v603, 1.0
    %v609 = vadd.f32 %v605, 1.0
    %v610 = vadd.f32 %v607, 1.0
    %v611 = vrcp.pop %v608
    %v612 = vmul.f32 %v608, %v611
    %v613 = vsub.f32 1.0, %v612
    %v614 = vmul.f32 %v611, %v613
    %v615 = vadd.f32 %v611, %v614
    %vm616 = vweird.f32 %v608
    %vm617 = vweird.f32 %v611
    %vm618 = vmor %vm616, %vm617
    %v619 = vsel %vm618, %v611, %v615
    %v620 = vand.u32 2147483647, %v608
    %vm621 = vcmp.eq.f32.partialorder %v620, 8.507059e+37
    %v622 = vand.u32 %v608, 2147483648
    %v623 = vor.u32 1.1754944e-38, %v622
    %v624 = vsel %vm621, %v623, %v619
    %v625 = vmul.f32 1.0, %v624
    %v626 = vrcp.pop %v609
    %v627 = vmul.f32 %v609, %v626
    %v628 = vsub.f32 1.0, %v627
    %v629 = vmul.f32 %v626, %v628
    %v630 = vadd.f32 %v626, %v629
    %vm631 = vweird.f32 %v609
    %vm632 = vweird.f32 %v626
    %vm633 = vmor %vm631, %vm632
    %v634 = vsel %vm633, %v626, %v630
    %v635 = vand.u32 2147483647, %v609
    %vm636 = vcmp.eq.f32.partialorder %v635, 8.507059e+37
    %v637 = vand.u32 %v609, 2147483648
    %v638 = vor.u32 1.1754944e-38, %v637
    %v639 = vsel %vm636, %v638, %v634
    %v640 = vmul.f32 1.0, %v639
    %v641 = vrcp.pop %v610
    %v642 = vmul.f32 %v610, %v641
    %v643 = vsub.f32 1.0, %v642
    %v644 = vmul.f32 %v641, %v643
    %v645 = vadd.f32 %v641, %v644
    %vm646 = vweird.f32 %v610
    %vm647 = vweird.f32 %v641
    %vm648 = vmor %vm646, %vm647
    %v649 = vsel %vm648, %v641, %v645
    %v650 = vand.u32 2147483647, %v610
    %vm651 = vcmp.eq.f32.partialorder %v650, 8.507059e+37
    %v652 = vand.u32 %v610, 2147483648
    %v653 = vor.u32 1.1754944e-38, %v652
    %v654 = vsel %vm651, %v653, %v649
    %v655 = vmul.f32 1.0, %v654
    %v656 = vtanh.pop %v598
    %v657 = vmul.f32 %v640, %v504
    %v658 = vmul.f32 %v625, %v656
    %v659 = vadd.f32 %v657, %v658
    %v660 = vtanh.pop %v659
    %v661 = vmul.f32 %v655, %v660
    %s662 = scalar_lea.vmem [#allocation8], 8
    %663 = vst [vmem:[%s662] sm:$0xff] %v661
    %s664 = smul.u32 2, 4
    %s665 = smul.addr %s664, 8
    %s666 = scalar_lea.vmem [#allocation4], %s665
    %v667 = vld [vmem:[%s666] sm:$0xff]
    %v668 = vld [vmem:[%s666 + $0x8] sm:$0xff]
    %v669 = vld [vmem:[%s666 + $0x10] sm:$0xff]
    %v670 = vld [vmem:[%s666 + $0x18] sm:$0xff]
    %671 = vmatpush.msra.mxu0 %v347
    %672 = vmatpush.msra.mxu0 %v343
    %673 = vmatpush.msra.mxu0 %v339
    %674 = vmatpush.msra.mxu0 %v335
    %675 = vmatpush.msra.mxu0 %v331
    %676 = vmatpush.msra.mxu0 %v327
    %677 = vmatpush.msra.mxu0 %v323
    %678 = vmatpush.msra.mxu0 %v319
    %679 = vmatpush.msra.mxu0 %v315
    %680 = vmatpush.msra.mxu0 %v311
    %681 = vmatpush.msra.mxu0 %v307
    %682 = vmatpush.msra.mxu0 %v303
    %683 = vmatpush.msra.mxu0 %v299
    %684 = vmatpush.msra.mxu0 %v295
    %685 = vmatpush.msra.mxu0 %v291
    %686 = vmatpush.msra.mxu0 %v287
    %687 = vmatmul.f32.gmra.mxu0 %v661
    %v688 = vpop.f32.mrf.mxu0
    %v689 = vadd.f32 0.0, %v688
    %690 = vdwg.mxu0
    %691 = vmatpush.msra.mxu0 %v348
    %692 = vmatpush.msra.mxu0 %v344
    %693 = vmatpush.msra.mxu0 %v340
    %694 = vmatpush.msra.mxu0 %v336
    %695 = vmatpush.msra.mxu0 %v332
    %696 = vmatpush.msra.mxu0 %v328
    %697 = vmatpush.msra.mxu0 %v324
    %698 = vmatpush.msra.mxu0 %v320
    %699 = vmatpush.msra.mxu0 %v316
    %700 = vmatpush.msra.mxu0 %v312
    %701 = vmatpush.msra.mxu0 %v308
    %702 = vmatpush.msra.mxu0 %v304
    %703 = vmatpush.msra.mxu0 %v300
    %704 = vmatpush.msra.mxu0 %v296
    %705 = vmatpush.msra.mxu0 %v292
    %706 = vmatpush.msra.mxu0 %v288
    %707 = vmatmul.f32.gmra.mxu0 %v661
    %v708 = vpop.f32.mrf.mxu0
    %v709 = vadd.f32 0.0, %v708
    %710 = vdwg.mxu0
    %711 = vmatpush.msra.mxu0 %v349
    %712 = vmatpush.msra.mxu0 %v345
    %713 = vmatpush.msra.mxu0 %v341
    %714 = vmatpush.msra.mxu0 %v337
    %715 = vmatpush.msra.mxu0 %v333
    %716 = vmatpush.msra.mxu0 %v329
    %717 = vmatpush.msra.mxu0 %v325
    %718 = vmatpush.msra.mxu0 %v321
    %719 = vmatpush.msra.mxu0 %v317
    %720 = vmatpush.msra.mxu0 %v313
    %721 = vmatpush.msra.mxu0 %v309
    %722 = vmatpush.msra.mxu0 %v305
    %723 = vmatpush.msra.mxu0 %v301
    %724 = vmatpush.msra.mxu0 %v297
    %725 = vmatpush.msra.mxu0 %v293
    %726 = vmatpush.msra.mxu0 %v289
    %727 = vmatmul.f32.gmra.mxu0 %v661
    %v728 = vpop.f32.mrf.mxu0
    %v729 = vadd.f32 0.0, %v728
    %730 = vdwg.mxu0
    %731 = vmatpush.msra.mxu0 %v350
    %732 = vmatpush.msra.mxu0 %v346
    %733 = vmatpush.msra.mxu0 %v342
    %734 = vmatpush.msra.mxu0 %v338
    %735 = vmatpush.msra.mxu0 %v334
    %736 = vmatpush.msra.mxu0 %v330
    %737 = vmatpush.msra.mxu0 %v326
    %738 = vmatpush.msra.mxu0 %v322
    %739 = vmatpush.msra.mxu0 %v318
    %740 = vmatpush.msra.mxu0 %v314
    %741 = vmatpush.msra.mxu0 %v310
    %742 = vmatpush.msra.mxu0 %v306
    %743 = vmatpush.msra.mxu0 %v302
    %744 = vmatpush.msra.mxu0 %v298
    %745 = vmatpush.msra.mxu0 %v294
    %746 = vmatpush.msra.mxu0 %v290
    %747 = vmatmul.f32.gmra.mxu0 %v661
    %v748 = vpop.f32.mrf.mxu0
    %v749 = vadd.f32 0.0, %v748
    %750 = vdwg.mxu0
    %v751 = vadd.f32 %v667, %v689
    %v752 = vadd.f32 %v668, %v709
    %v753 = vadd.f32 %v669, %v729
    %v754 = vadd.f32 %v670, %v749
    %v755 = vxor.u32 %v751, 2147483648
    %v756 = vxor.u32 %v752, 2147483648
    %v757 = vxor.u32 %v753, 2147483648
    %v758 = vmul.f32 %v755, 1.442695
    %v759 = vpow.pop %v758
    %v760 = vmul.f32 %v756, 1.442695
    %v761 = vpow.pop %v760
    %v762 = vmul.f32 %v757, 1.442695
    %v763 = vpow.pop %v762
    %v764 = vadd.f32 %v759, 1.0
    %v765 = vadd.f32 %v761, 1.0
    %v766 = vadd.f32 %v763, 1.0
    %v767 = vrcp.pop %v764
    %v768 = vmul.f32 %v764, %v767
    %v769 = vsub.f32 1.0, %v768
    %v770 = vmul.f32 %v767, %v769
    %v771 = vadd.f32 %v767, %v770
    %vm772 = vweird.f32 %v764
    %vm773 = vweird.f32 %v767
    %vm774 = vmor %vm772, %vm773
    %v775 = vsel %vm774, %v767, %v771
    %v776 = vand.u32 2147483647, %v764
    %vm777 = vcmp.eq.f32.partialorder %v776, 8.507059e+37
    %v778 = vand.u32 %v764, 2147483648
    %v779 = vor.u32 1.1754944e-38, %v778
    %v780 = vsel %vm777, %v779, %v775
    %v781 = vmul.f32 1.0, %v780
    %v782 = vrcp.pop %v765
    %v783 = vmul.f32 %v765, %v782
    %v784 = vsub.f32 1.0, %v783
    %v785 = vmul.f32 %v782, %v784
    %v786 = vadd.f32 %v782, %v785
    %vm787 = vweird.f32 %v765
    %vm788 = vweird.f32 %v782
    %vm789 = vmor %vm787, %vm788
    %v790 = vsel %vm789, %v782, %v786
    %v791 = vand.u32 2147483647, %v765
    %vm792 = vcmp.eq.f32.partialorder %v791, 8.507059e+37
    %v793 = vand.u32 %v765, 2147483648
    %v794 = vor.u32 1.1754944e-38, %v793
    %v795 = vsel %vm792, %v794, %v790
    %v796 = vmul.f32 1.0, %v795
    %v797 = vrcp.pop %v766
    %v798 = vmul.f32 %v766, %v797
    %v799 = vsub.f32 1.0, %v798
    %v800 = vmul.f32 %v797, %v799
    %v801 = vadd.f32 %v797, %v800
    %vm802 = vweird.f32 %v766
    %vm803 = vweird.f32 %v797
    %vm804 = vmor %vm802, %vm803
    %v805 = vsel %vm804, %v797, %v801
    %v806 = vand.u32 2147483647, %v766
    %vm807 = vcmp.eq.f32.partialorder %v806, 8.507059e+37
    %v808 = vand.u32 %v766, 2147483648
    %v809 = vor.u32 1.1754944e-38, %v808
    %v810 = vsel %vm807, %v809, %v805
    %v811 = vmul.f32 1.0, %v810
    %v812 = vtanh.pop %v754
    %v813 = vmul.f32 %v796, %v659
    %v814 = vmul.f32 %v781, %v812
    %v815 = vadd.f32 %v813, %v814
    %v816 = vtanh.pop %v815
    %v817 = vmul.f32 %v811, %v816
    %s818 = scalar_lea.vmem [#allocation8], 16
    %819 = vst [vmem:[%s818] sm:$0xff] %v817
    %s820 = smul.u32 3, 4
    %s821 = smul.addr %s820, 8
    %s822 = scalar_lea.vmem [#allocation4], %s821
    %v823 = vld [vmem:[%s822] sm:$0xff]
    %v824 = vld [vmem:[%s822 + $0x8] sm:$0xff]
    %v825 = vld [vmem:[%s822 + $0x10] sm:$0xff]
    %v826 = vld [vmem:[%s822 + $0x18] sm:$0xff]
    %827 = vmatpush.msra.mxu0 %v347
    %828 = vmatpush.msra.mxu0 %v343
    %829 = vmatpush.msra.mxu0 %v339
    %830 = vmatpush.msra.mxu0 %v335
    %831 = vmatpush.msra.mxu0 %v331
    %832 = vmatpush.msra.mxu0 %v327
    %833 = vmatpush.msra.mxu0 %v323
    %834 = vmatpush.msra.mxu0 %v319
    %835 = vmatpush.msra.mxu0 %v315
    %836 = vmatpush.msra.mxu0 %v311
    %837 = vmatpush.msra.mxu0 %v307
    %838 = vmatpush.msra.mxu0 %v303
    %839 = vmatpush.msra.mxu0 %v299
    %840 = vmatpush.msra.mxu0 %v295
    %841 = vmatpush.msra.mxu0 %v291
    %842 = vmatpush.msra.mxu0 %v287
    %843 = vmatmul.f32.gmra.mxu0 %v817
    %v844 = vpop.f32.mrf.mxu0
    %v845 = vadd.f32 0.0, %v844
    %846 = vdwg.mxu0
    %847 = vmatpush.msra.mxu0 %v348
    %848 = vmatpush.msra.mxu0 %v344
    %849 = vmatpush.msra.mxu0 %v340
    %850 = vmatpush.msra.mxu0 %v336
    %851 = vmatpush.msra.mxu0 %v332
    %852 = vmatpush.msra.mxu0 %v328
    %853 = vmatpush.msra.mxu0 %v324
    %854 = vmatpush.msra.mxu0 %v320
    %855 = vmatpush.msra.mxu0 %v316
    %856 = vmatpush.msra.mxu0 %v312
    %857 = vmatpush.msra.mxu0 %v308
    %858 = vmatpush.msra.mxu0 %v304
    %859 = vmatpush.msra.mxu0 %v300
    %860 = vmatpush.msra.mxu0 %v296
    %861 = vmatpush.msra.mxu0 %v292
    %862 = vmatpush.msra.mxu0 %v288
    %863 = vmatmul.f32.gmra.mxu0 %v817
    %v864 = vpop.f32.mrf.mxu0
    %v865 = vadd.f32 0.0, %v864
    %866 = vdwg.mxu0
    %867 = vmatpush.msra.mxu0 %v349
    %868 = vmatpush.msra.mxu0 %v345
    %869 = vmatpush.msra.mxu0 %v341
    %870 = vmatpush.msra.mxu0 %v337
    %871 = vmatpush.msra.mxu0 %v333
    %872 = vmatpush.msra.mxu0 %v329
    %873 = vmatpush.msra.mxu0 %v325
    %874 = vmatpush.msra.mxu0 %v321
    %875 = vmatpush.msra.mxu0 %v317
    %876 = vmatpush.msra.mxu0 %v313
    %877 = vmatpush.msra.mxu0 %v309
    %878 = vmatpush.msra.mxu0 %v305
    %879 = vmatpush.msra.mxu0 %v301
    %880 = vmatpush.msra.mxu0 %v297
    %881 = vmatpush.msra.mxu0 %v293
    %882 = vmatpush.msra.mxu0 %v289
    %883 = vmatmul.f32.gmra.mxu0 %v817
    %v884 = vpop.f32.mrf.mxu0
    %v885 = vadd.f32 0.0, %v884
    %886 = vdwg.mxu0
    %887 = vmatpush.msra.mxu0 %v350
    %888 = vmatpush.msra.mxu0 %v346
    %889 = vmatpush.msra.mxu0 %v342
    %890 = vmatpush.msra.mxu0 %v338
    %891 = vmatpush.msra.mxu0 %v334
    %892 = vmatpush.msra.mxu0 %v330
    %893 = vmatpush.msra.mxu0 %v326
    %894 = vmatpush.msra.mxu0 %v322
    %895 = vmatpush.msra.mxu0 %v318
    %896 = vmatpush.msra.mxu0 %v314
    %897 = vmatpush.msra.mxu0 %v310
    %898 = vmatpush.msra.mxu0 %v306
    %899 = vmatpush.msra.mxu0 %v302
    %900 = vmatpush.msra.mxu0 %v298
    %901 = vmatpush.msra.mxu0 %v294
    %902 = vmatpush.msra.mxu0 %v290
    %903 = vmatmul.f32.gmra.mxu0 %v817
    %v904 = vpop.f32.mrf.mxu0
    %v905 = vadd.f32 0.0, %v904
    %906 = vdwg.mxu0
    %v907 = vadd.f32 %v823, %v845
    %v908 = vadd.f32 %v824, %v865
    %v909 = vadd.f32 %v825, %v885
    %v910 = vadd.f32 %v826, %v905
    %v911 = vxor.u32 %v907, 2147483648
    %v912 = vxor.u32 %v908, 2147483648
    %v913 = vxor.u32 %v909, 2147483648
    %v914 = vmul.f32 %v911, 1.442695
    %v915 = vpow.pop %v914
    %v916 = vmul.f32 %v912, 1.442695
    %v917 = vpow.pop %v916
    %v918 = vmul.f32 %v913, 1.442695
    %v919 = vpow.pop %v918
    %v920 = vadd.f32 %v915, 1.0
    %v921 = vadd.f32 %v917, 1.0
    %v922 = vadd.f32 %v919, 1.0
    %v923 = vrcp.pop %v920
    %v924 = vmul.f32 %v920, %v923
    %v925 = vsub.f32 1.0, %v924
    %v926 = vmul.f32 %v923, %v925
    %v927 = vadd.f32 %v923, %v926
    %vm928 = vweird.f32 %v920
    %vm929 = vweird.f32 %v923
    %vm930 = vmor %vm928, %vm929
    %v931 = vsel %vm930, %v923, %v927
    %v932 = vand.u32 2147483647, %v920
    %vm933 = vcmp.eq.f32.partialorder %v932, 8.507059e+37
    %v934 = vand.u32 %v920, 2147483648
    %v935 = vor.u32 1.1754944e-38, %v934
    %v936 = vsel %vm933, %v935, %v931
    %v937 = vmul.f32 1.0, %v936
    %v938 = vrcp.pop %v921
    %v939 = vmul.f32 %v921, %v938
    %v940 = vsub.f32 1.0, %v939
    %v941 = vmul.f32 %v938, %v940
    %v942 = vadd.f32 %v938, %v941
    %vm943 = vweird.f32 %v921
    %vm944 = vweird.f32 %v938
    %vm945 = vmor %vm943, %vm944
    %v946 = vsel %vm945, %v938, %v942
    %v947 = vand.u32 2147483647, %v921
    %vm948 = vcmp.eq.f32.partialorder %v947, 8.507059e+37
    %v949 = vand.u32 %v921, 2147483648
    %v950 = vor.u32 1.1754944e-38, %v949
    %v951 = vsel %vm948, %v950, %v946
    %v952 = vmul.f32 1.0, %v951
    %v953 = vrcp.pop %v922
    %v954 = vmul.f32 %v922, %v953
    %v955 = vsub.f32 1.0, %v954
    %v956 = vmul.f32 %v953, %v955
    %v957 = vadd.f32 %v953, %v956
    %vm958 = vweird.f32 %v922
    %vm959 = vweird.f32 %v953
    %vm960 = vmor %vm958, %vm959
    %v961 = vsel %vm960, %v953, %v957
    %v962 = vand.u32 2147483647, %v922
    %vm963 = vcmp.eq.f32.partialorder %v962, 8.507059e+37
    %v964 = vand.u32 %v922, 2147483648
    %v965 = vor.u32 1.1754944e-38, %v964
    %v966 = vsel %vm963, %v965, %v961
    %v967 = vmul.f32 1.0, %v966
    %v968 = vtanh.pop %v910
    %v969 = vmul.f32 %v952, %v815
    %v970 = vmul.f32 %v937, %v968
    %v971 = vadd.f32 %v969, %v970
    %v972 = vtanh.pop %v971
    %v973 = vmul.f32 %v967, %v972
    %s974 = scalar_lea.vmem [#allocation8], 24
    %975 = vst [vmem:[%s974] sm:$0xff] %v973
    %s976 = smul.u32 4, 4
    %s977 = smul.addr %s976, 8
    %s978 = scalar_lea.vmem [#allocation4], %s977
    %v979 = vld [vmem:[%s978] sm:$0xff]
    %v980 = vld [vmem:[%s978 + $0x8] sm:$0xff]
    %v981 = vld [vmem:[%s978 + $0x10] sm:$0xff]
    %v982 = vld [vmem:[%s978 + $0x18] sm:$0xff]
    %983 = vmatpush.msra.mxu0 %v347
    %984 = vmatpush.msra.mxu0 %v343
    %985 = vmatpush.msra.mxu0 %v339
    %986 = vmatpush.msra.mxu0 %v335
    %987 = vmatpush.msra.mxu0 %v331
    %988 = vmatpush.msra.mxu0 %v327
    %989 = vmatpush.msra.mxu0 %v323
    %990 = vmatpush.msra.mxu0 %v319
    %991 = vmatpush.msra.mxu0 %v315
    %992 = vmatpush.msra.mxu0 %v311
    %993 = vmatpush.msra.mxu0 %v307
    %994 = vmatpush.msra.mxu0 %v303
    %995 = vmatpush.msra.mxu0 %v299
    %996 = vmatpush.msra.mxu0 %v295
    %997 = vmatpush.msra.mxu0 %v291
    %998 = vmatpush.msra.mxu0 %v287
    %999 = vmatmul.f32.gmra.mxu0 %v973
    %v1000 = vpop.f32.mrf.mxu0
    %v1001 = vadd.f32 0.0, %v1000
    %1002 = vdwg.mxu0
    %1003 = vmatpush.msra.mxu0 %v348
    %1004 = vmatpush.msra.mxu0 %v344
    %1005 = vmatpush.msra.mxu0 %v340
    %1006 = vmatpush.msra.mxu0 %v336
    %1007 = vmatpush.msra.mxu0 %v332
    %1008 = vmatpush.msra.mxu0 %v328
    %1009 = vmatpush.msra.mxu0 %v324
    %1010 = vmatpush.msra.mxu0 %v320
    %1011 = vmatpush.msra.mxu0 %v316
    %1012 = vmatpush.msra.mxu0 %v312
    %1013 = vmatpush.msra.mxu0 %v308
    %1014 = vmatpush.msra.mxu0 %v304
    %1015 = vmatpush.msra.mxu0 %v300
    %1016 = vmatpush.msra.mxu0 %v296
    %1017 = vmatpush.msra.mxu0 %v292
    %1018 = vmatpush.msra.mxu0 %v288
    %1019 = vmatmul.f32.gmra.mxu0 %v973
    %v1020 = vpop.f32.mrf.mxu0
    %v1021 = vadd.f32 0.0, %v1020
    %1022 = vdwg.mxu0
    %1023 = vmatpush.msra.mxu0 %v349
    %1024 = vmatpush.msra.mxu0 %v345
    %1025 = vmatpush.msra.mxu0 %v341
    %1026 = vmatpush.msra.mxu0 %v337
    %1027 = vmatpush.msra.mxu0 %v333
    %1028 = vmatpush.msra.mxu0 %v329
    %1029 = vmatpush.msra.mxu0 %v325
    %1030 = vmatpush.msra.mxu0 %v321
    %1031 = vmatpush.msra.mxu0 %v317
    %1032 = vmatpush.msra.mxu0 %v313
    %1033 = vmatpush.msra.mxu0 %v309
    %1034 = vmatpush.msra.mxu0 %v305
    %1035 = vmatpush.msra.mxu0 %v301
    %1036 = vmatpush.msra.mxu0 %v297
    %1037 = vmatpush.msra.mxu0 %v293
    %1038 = vmatpush.msra.mxu0 %v289
    %1039 = vmatmul.f32.gmra.mxu0 %v973
    %v1040 = vpop.f32.mrf.mxu0
    %v1041 = vadd.f32 0.0, %v1040
    %1042 = vdwg.mxu0
    %1043 = vmatpush.msra.mxu0 %v350
    %1044 = vmatpush.msra.mxu0 %v346
    %1045 = vmatpush.msra.mxu0 %v342
    %1046 = vmatpush.msra.mxu0 %v338
    %1047 = vmatpush.msra.mxu0 %v334
    %1048 = vmatpush.msra.mxu0 %v330
    %1049 = vmatpush.msra.mxu0 %v326
    %1050 = vmatpush.msra.mxu0 %v322
    %1051 = vmatpush.msra.mxu0 %v318
    %1052 = vmatpush.msra.mxu0 %v314
    %1053 = vmatpush.msra.mxu0 %v310
    %1054 = vmatpush.msra.mxu0 %v306
    %1055 = vmatpush.msra.mxu0 %v302
    %1056 = vmatpush.msra.mxu0 %v298
    %1057 = vmatpush.msra.mxu0 %v294
    %1058 = vmatpush.msra.mxu0 %v290
    %1059 = vmatmul.f32.gmra.mxu0 %v973
    %v1060 = vpop.f32.mrf.mxu0
    %v1061 = vadd.f32 0.0, %v1060
    %1062 = vdwg.mxu0
    %v1063 = vadd.f32 %v979, %v1001
    %v1064 = vadd.f32 %v980, %v1021
    %v1065 = vadd.f32 %v981, %v1041
    %v1066 = vadd.f32 %v982, %v1061
    %v1067 = vxor.u32 %v1063, 2147483648
    %v1068 = vxor.u32 %v1064, 2147483648
    %v1069 = vxor.u32 %v1065, 2147483648
    %v1070 = vmul.f32 %v1067, 1.442695
    %v1071 = vpow.pop %v1070
    %v1072 = vmul.f32 %v1068, 1.442695
    %v1073 = vpow.pop %v1072
    %v1074 = vmul.f32 %v1069, 1.442695
    %v1075 = vpow.pop %v1074
    %v1076 = vadd.f32 %v1071, 1.0
    %v1077 = vadd.f32 %v1073, 1.0
    %v1078 = vadd.f32 %v1075, 1.0
    %v1079 = vrcp.pop %v1076
    %v1080 = vmul.f32 %v1076, %v1079
    %v1081 = vsub.f32 1.0, %v1080
    %v1082 = vmul.f32 %v1079, %v1081
    %v1083 = vadd.f32 %v1079, %v1082
    %vm1084 = vweird.f32 %v1076
    %vm1085 = vweird.f32 %v1079
    %vm1086 = vmor %vm1084, %vm1085
    %v1087 = vsel %vm1086, %v1079, %v1083
    %v1088 = vand.u32 2147483647, %v1076
    %vm1089 = vcmp.eq.f32.partialorder %v1088, 8.507059e+37
    %v1090 = vand.u32 %v1076, 2147483648
    %v1091 = vor.u32 1.1754944e-38, %v1090
    %v1092 = vsel %vm1089, %v1091, %v1087
    %v1093 = vmul.f32 1.0, %v1092
    %v1094 = vrcp.pop %v1077
    %v1095 = vmul.f32 %v1077, %v1094
    %v1096 = vsub.f32 1.0, %v1095
    %v1097 = vmul.f32 %v1094, %v1096
    %v1098 = vadd.f32 %v1094, %v1097
    %vm1099 = vweird.f32 %v1077
    %vm1100 = vweird.f32 %v1094
    %vm1101 = vmor %vm1099, %vm1100
    %v1102 = vsel %vm1101, %v1094, %v1098
    %v1103 = vand.u32 2147483647, %v1077
    %vm1104 = vcmp.eq.f32.partialorder %v1103, 8.507059e+37
    %v1105 = vand.u32 %v1077, 2147483648
    %v1106 = vor.u32 1.1754944e-38, %v1105
    %v1107 = vsel %vm1104, %v1106, %v1102
    %v1108 = vmul.f32 1.0, %v1107
    %v1109 = vrcp.pop %v1078
    %v1110 = vmul.f32 %v1078, %v1109
    %v1111 = vsub.f32 1.0, %v1110
    %v1112 = vmul.f32 %v1109, %v1111
    %v1113 = vadd.f32 %v1109, %v1112
    %vm1114 = vweird.f32 %v1078
    %vm1115 = vweird.f32 %v1109
    %vm1116 = vmor %vm1114, %vm1115
    %v1117 = vsel %vm1116, %v1109, %v1113
    %v1118 = vand.u32 2147483647, %v1078
    %vm1119 = vcmp.eq.f32.partialorder %v1118, 8.507059e+37
    %v1120 = vand.u32 %v1078, 2147483648
    %v1121 = vor.u32 1.1754944e-38, %v1120
    %v1122 = vsel %vm1119, %v1121, %v1117
    %v1123 = vmul.f32 1.0, %v1122
    %v1124 = vtanh.pop %v1066
    %v1125 = vmul.f32 %v1108, %v971
    %v1126 = vmul.f32 %v1093, %v1124
    %v1127 = vadd.f32 %v1125, %v1126
    %v1128 = vtanh.pop %v1127
    %v1129 = vmul.f32 %v1123, %v1128
    %s1130 = scalar_lea.vmem [#allocation8], 32
    %1131 = vst [vmem:[%s1130] sm:$0xff] %v1129
    %s1132 = smul.u32 5, 4
    %s1133 = smul.addr %s1132, 8
    %s1134 = scalar_lea.vmem [#allocation4], %s1133
    %v1135 = vld [vmem:[%s1134] sm:$0xff]
    %v1136 = vld [vmem:[%s1134 + $0x8] sm:$0xff]
    %v1137 = vld [vmem:[%s1134 + $0x10] sm:$0xff]
    %v1138 = vld [vmem:[%s1134 + $0x18] sm:$0xff]
    %1139 = vmatpush.msra.mxu0 %v347
    %1140 = vmatpush.msra.mxu0 %v343
    %1141 = vmatpush.msra.mxu0 %v339
    %1142 = vmatpush.msra.mxu0 %v335
    %1143 = vmatpush.msra.mxu0 %v331
    %1144 = vmatpush.msra.mxu0 %v327
    %1145 = vmatpush.msra.mxu0 %v323
    %1146 = vmatpush.msra.mxu0 %v319
    %1147 = vmatpush.msra.mxu0 %v315
    %1148 = vmatpush.msra.mxu0 %v311
    %1149 = vmatpush.msra.mxu0 %v307
    %1150 = vmatpush.msra.mxu0 %v303
    %1151 = vmatpush.msra.mxu0 %v299
    %1152 = vmatpush.msra.mxu0 %v295
    %1153 = vmatpush.msra.mxu0 %v291
    %1154 = vmatpush.msra.mxu0 %v287
    %1155 = vmatmul.f32.gmra.mxu0 %v1129
    %v1156 = vpop.f32.mrf.mxu0
    %v1157 = vadd.f32 0.0, %v1156
    %1158 = vdwg.mxu0
    %1159 = vmatpush.msra.mxu0 %v348
    %1160 = vmatpush.msra.mxu0 %v344
    %1161 = vmatpush.msra.mxu0 %v340
    %1162 = vmatpush.msra.mxu0 %v336
    %1163 = vmatpush.msra.mxu0 %v332
    %1164 = vmatpush.msra.mxu0 %v328
    %1165 = vmatpush.msra.mxu0 %v324
    %1166 = vmatpush.msra.mxu0 %v320
    %1167 = vmatpush.msra.mxu0 %v316
    %1168 = vmatpush.msra.mxu0 %v312
    %1169 = vmatpush.msra.mxu0 %v308
    %1170 = vmatpush.msra.mxu0 %v304
    %1171 = vmatpush.msra.mxu0 %v300
    %1172 = vmatpush.msra.mxu0 %v296
    %1173 = vmatpush.msra.mxu0 %v292
    %1174 = vmatpush.msra.mxu0 %v288
    %1175 = vmatmul.f32.gmra.mxu0 %v1129
    %v1176 = vpop.f32.mrf.mxu0
    %v1177 = vadd.f32 0.0, %v1176
    %1178 = vdwg.mxu0
    %1179 = vmatpush.msra.mxu0 %v349
    %1180 = vmatpush.msra.mxu0 %v345
    %1181 = vmatpush.msra.mxu0 %v341
    %1182 = vmatpush.msra.mxu0 %v337
    %1183 = vmatpush.msra.mxu0 %v333
    %1184 = vmatpush.msra.mxu0 %v329
    %1185 = vmatpush.msra.mxu0 %v325
    %1186 = vmatpush.msra.mxu0 %v321
    %1187 = vmatpush.msra.mxu0 %v317
    %1188 = vmatpush.msra.mxu0 %v313
    %1189 = vmatpush.msra.mxu0 %v309
    %1190 = vmatpush.msra.mxu0 %v305
    %1191 = vmatpush.msra.mxu0 %v301
    %1192 = vmatpush.msra.mxu0 %v297
    %1193 = vmatpush.msra.mxu0 %v293
    %1194 = vmatpush.msra.mxu0 %v289
    %1195 = vmatmul.f32.gmra.mxu0 %v1129
    %v1196 = vpop.f32.mrf.mxu0
    %v1197 = vadd.f32 0.0, %v1196
    %1198 = vdwg.mxu0
    %1199 = vmatpush.msra.mxu0 %v350
    %1200 = vmatpush.msra.mxu0 %v346
    %1201 = vmatpush.msra.mxu0 %v342
    %1202 = vmatpush.msra.mxu0 %v338
    %1203 = vmatpush.msra.mxu0 %v334
    %1204 = vmatpush.msra.mxu0 %v330
    %1205 = vmatpush.msra.mxu0 %v326
    %1206 = vmatpush.msra.mxu0 %v322
    %1207 = vmatpush.msra.mxu0 %v318
    %1208 = vmatpush.msra.mxu0 %v314
    %1209 = vmatpush.msra.mxu0 %v310
    %1210 = vmatpush.msra.mxu0 %v306
    %1211 = vmatpush.msra.mxu0 %v302
    %1212 = vmatpush.msra.mxu0 %v298
    %1213 = vmatpush.msra.mxu0 %v294
    %1214 = vmatpush.msra.mxu0 %v290
    %1215 = vmatmul.f32.gmra.mxu0 %v1129
    %v1216 = vpop.f32.mrf.mxu0
    %v1217 = vadd.f32 0.0, %v1216
    %1218 = vdwg.mxu0
    %v1219 = vadd.f32 %v1135, %v1157
    %v1220 = vadd.f32 %v1136, %v1177
    %v1221 = vadd.f32 %v1137, %v1197
    %v1222 = vadd.f32 %v1138, %v1217
    %v1223 = vxor.u32 %v1219, 2147483648
    %v1224 = vxor.u32 %v1220, 2147483648
    %v1225 = vxor.u32 %v1221, 2147483648
    %v1226 = vmul.f32 %v1223, 1.442695
    %v1227 = vpow.pop %v1226
    %v1228 = vmul.f32 %v1224, 1.442695
    %v1229 = vpow.pop %v1228
    %v1230 = vmul.f32 %v1225, 1.442695
    %v1231 = vpow.pop %v1230
    %v1232 = vadd.f32 %v1227, 1.0
    %v1233 = vadd.f32 %v1229, 1.0
    %v1234 = vadd.f32 %v1231, 1.0
    %v1235 = vrcp.pop %v1232
    %v1236 = vmul.f32 %v1232, %v1235
    %v1237 = vsub.f32 1.0, %v1236
    %v1238 = vmul.f32 %v1235, %v1237
    %v1239 = vadd.f32 %v1235, %v1238
    %vm1240 = vweird.f32 %v1232
    %vm1241 = vweird.f32 %v1235
    %vm1242 = vmor %vm1240, %vm1241
    %v1243 = vsel %vm1242, %v1235, %v1239
    %v1244 = vand.u32 2147483647, %v1232
    %vm1245 = vcmp.eq.f32.partialorder %v1244, 8.507059e+37
    %v1246 = vand.u32 %v1232, 2147483648
    %v1247 = vor.u32 1.1754944e-38, %v1246
    %v1248 = vsel %vm1245, %v1247, %v1243
    %v1249 = vmul.f32 1.0, %v1248
    %v1250 = vrcp.pop %v1233
    %v1251 = vmul.f32 %v1233, %v1250
    %v1252 = vsub.f32 1.0, %v1251
    %v1253 = vmul.f32 %v1250, %v1252
    %v1254 = vadd.f32 %v1250, %v1253
    %vm1255 = vweird.f32 %v1233
    %vm1256 = vweird.f32 %v1250
    %vm1257 = vmor %vm1255, %vm1256
    %v1258 = vsel %vm1257, %v1250, %v1254
    %v1259 = vand.u32 2147483647, %v1233
    %vm1260 = vcmp.eq.f32.partialorder %v1259, 8.507059e+37
    %v1261 = vand.u32 %v1233, 2147483648
    %v1262 = vor.u32 1.1754944e-38, %v1261
    %v1263 = vsel %vm1260, %v1262, %v1258
    %v1264 = vmul.f32 1.0, %v1263
    %v1265 = vrcp.pop %v1234
    %v1266 = vmul.f32 %v1234, %v1265
    %v1267 = vsub.f32 1.0, %v1266
    %v1268 = vmul.f32 %v1265, %v1267
    %v1269 = vadd.f32 %v1265, %v1268
    %vm1270 = vweird.f32 %v1234
    %vm1271 = vweird.f32 %v1265
    %vm1272 = vmor %vm1270, %vm1271
    %v1273 = vsel %vm1272, %v1265, %v1269
    %v1274 = vand.u32 2147483647, %v1234
    %vm1275 = vcmp.eq.f32.partialorder %v1274, 8.507059e+37
    %v1276 = vand.u32 %v1234, 2147483648
    %v1277 = vor.u32 1.1754944e-38, %v1276
    %v1278 = vsel %vm1275, %v1277, %v1273
    %v1279 = vmul.f32 1.0, %v1278
    %v1280 = vtanh.pop %v1222
    %v1281 = vmul.f32 %v1264, %v1127
    %v1282 = vmul.f32 %v1249, %v1280
    %v1283 = vadd.f32 %v1281, %v1282
    %v1284 = vtanh.pop %v1283
    %v1285 = vmul.f32 %v1279, %v1284
    %s1286 = scalar_lea.vmem [#allocation8], 40
    %1287 = vst [vmem:[%s1286] sm:$0xff] %v1285
    %s1288 = smul.u32 6, 4
    %s1289 = smul.addr %s1288, 8
    %s1290 = scalar_lea.vmem [#allocation4], %s1289
    %v1291 = vld [vmem:[%s1290] sm:$0xff]
    %v1292 = vld [vmem:[%s1290 + $0x8] sm:$0xff]
    %v1293 = vld [vmem:[%s1290 + $0x10] sm:$0xff]
    %v1294 = vld [vmem:[%s1290 + $0x18] sm:$0xff]
    %1295 = vmatpush.msra.mxu0 %v347
    %1296 = vmatpush.msra.mxu0 %v343
    %1297 = vmatpush.msra.mxu0 %v339
    %1298 = vmatpush.msra.mxu0 %v335
    %1299 = vmatpush.msra.mxu0 %v331
    %1300 = vmatpush.msra.mxu0 %v327
    %1301 = vmatpush.msra.mxu0 %v323
    %1302 = vmatpush.msra.mxu0 %v319
    %1303 = vmatpush.msra.mxu0 %v315
    %1304 = vmatpush.msra.mxu0 %v311
    %1305 = vmatpush.msra.mxu0 %v307
    %1306 = vmatpush.msra.mxu0 %v303
    %1307 = vmatpush.msra.mxu0 %v299
    %1308 = vmatpush.msra.mxu0 %v295
    %1309 = vmatpush.msra.mxu0 %v291
    %1310 = vmatpush.msra.mxu0 %v287
    %1311 = vmatmul.f32.gmra.mxu0 %v1285
    %v1312 = vpop.f32.mrf.mxu0
    %v1313 = vadd.f32 0.0, %v1312
    %1314 = vdwg.mxu0
    %1315 = vmatpush.msra.mxu0 %v348
    %1316 = vmatpush.msra.mxu0 %v344
    %1317 = vmatpush.msra.mxu0 %v340
    %1318 = vmatpush.msra.mxu0 %v336
    %1319 = vmatpush.msra.mxu0 %v332
    %1320 = vmatpush.msra.mxu0 %v328
    %1321 = vmatpush.msra.mxu0 %v324
    %1322 = vmatpush.msra.mxu0 %v320
    %1323 = vmatpush.msra.mxu0 %v316
    %1324 = vmatpush.msra.mxu0 %v312
    %1325 = vmatpush.msra.mxu0 %v308
    %1326 = vmatpush.msra.mxu0 %v304
    %1327 = vmatpush.msra.mxu0 %v300
    %1328 = vmatpush.msra.mxu0 %v296
    %1329 = vmatpush.msra.mxu0 %v292
    %1330 = vmatpush.msra.mxu0 %v288
    %1331 = vmatmul.f32.gmra.mxu0 %v1285
    %v1332 = vpop.f32.mrf.mxu0
    %v1333 = vadd.f32 0.0, %v1332
    %1334 = vdwg.mxu0
    %1335 = vmatpush.msra.mxu0 %v349
    %1336 = vmatpush.msra.mxu0 %v345
    %1337 = vmatpush.msra.mxu0 %v341
    %1338 = vmatpush.msra.mxu0 %v337
    %1339 = vmatpush.msra.mxu0 %v333
    %1340 = vmatpush.msra.mxu0 %v329
    %1341 = vmatpush.msra.mxu0 %v325
    %1342 = vmatpush.msra.mxu0 %v321
    %1343 = vmatpush.msra.mxu0 %v317
    %1344 = vmatpush.msra.mxu0 %v313
    %1345 = vmatpush.msra.mxu0 %v309
    %1346 = vmatpush.msra.mxu0 %v305
    %1347 = vmatpush.msra.mxu0 %v301
    %1348 = vmatpush.msra.mxu0 %v297
    %1349 = vmatpush.msra.mxu0 %v293
    %1350 = vmatpush.msra.mxu0 %v289
    %1351 = vmatmul.f32.gmra.mxu0 %v1285
    %v1352 = vpop.f32.mrf.mxu0
    %v1353 = vadd.f32 0.0, %v1352
    %1354 = vdwg.mxu0
    %1355 = vmatpush.msra.mxu0 %v350
    %1356 = vmatpush.msra.mxu0 %v346
    %1357 = vmatpush.msra.mxu0 %v342
    %1358 = vmatpush.msra.mxu0 %v338
    %1359 = vmatpush.msra.mxu0 %v334
    %1360 = vmatpush.msra.mxu0 %v330
    %1361 = vmatpush.msra.mxu0 %v326
    %1362 = vmatpush.msra.mxu0 %v322
    %1363 = vmatpush.msra.mxu0 %v318
    %1364 = vmatpush.msra.mxu0 %v314
    %1365 = vmatpush.msra.mxu0 %v310
    %1366 = vmatpush.msra.mxu0 %v306
    %1367 = vmatpush.msra.mxu0 %v302
    %1368 = vmatpush.msra.mxu0 %v298
    %1369 = vmatpush.msra.mxu0 %v294
    %1370 = vmatpush.msra.mxu0 %v290
    %1371 = vmatmul.f32.gmra.mxu0 %v1285
    %v1372 = vpop.f32.mrf.mxu0
    %v1373 = vadd.f32 0.0, %v1372
    %1374 = vdwg.mxu0
    %v1375 = vadd.f32 %v1291, %v1313
    %v1376 = vadd.f32 %v1292, %v1333
    %v1377 = vadd.f32 %v1293, %v1353
    %v1378 = vadd.f32 %v1294, %v1373
    %v1379 = vxor.u32 %v1375, 2147483648
    %v1380 = vxor.u32 %v1376, 2147483648
    %v1381 = vxor.u32 %v1377, 2147483648
    %v1382 = vmul.f32 %v1379, 1.442695
    %v1383 = vpow.pop %v1382
    %v1384 = vmul.f32 %v1380, 1.442695
    %v1385 = vpow.pop %v1384
    %v1386 = vmul.f32 %v1381, 1.442695
    %v1387 = vpow.pop %v1386
    %v1388 = vadd.f32 %v1383, 1.0
    %v1389 = vadd.f32 %v1385, 1.0
    %v1390 = vadd.f32 %v1387, 1.0
    %v1391 = vrcp.pop %v1388
    %v1392 = vmul.f32 %v1388, %v1391
    %v1393 = vsub.f32 1.0, %v1392
    %v1394 = vmul.f32 %v1391, %v1393
    %v1395 = vadd.f32 %v1391, %v1394
    %vm1396 = vweird.f32 %v1388
    %vm1397 = vweird.f32 %v1391
    %vm1398 = vmor %vm1396, %vm1397
    %v1399 = vsel %vm1398, %v1391, %v1395
    %v1400 = vand.u32 2147483647, %v1388
    %vm1401 = vcmp.eq.f32.partialorder %v1400, 8.507059e+37
    %v1402 = vand.u32 %v1388, 2147483648
    %v1403 = vor.u32 1.1754944e-38, %v1402
    %v1404 = vsel %vm1401, %v1403, %v1399
    %v1405 = vmul.f32 1.0, %v1404
    %v1406 = vrcp.pop %v1389
    %v1407 = vmul.f32 %v1389, %v1406
    %v1408 = vsub.f32 1.0, %v1407
    %v1409 = vmul.f32 %v1406, %v1408
    %v1410 = vadd.f32 %v1406, %v1409
    %vm1411 = vweird.f32 %v1389
    %vm1412 = vweird.f32 %v1406
    %vm1413 = vmor %vm1411, %vm1412
    %v1414 = vsel %vm1413, %v1406, %v1410
    %v1415 = vand.u32 2147483647, %v1389
    %vm1416 = vcmp.eq.f32.partialorder %v1415, 8.507059e+37
    %v1417 = vand.u32 %v1389, 2147483648
    %v1418 = vor.u32 1.1754944e-38, %v1417
    %v1419 = vsel %vm1416, %v1418, %v1414
    %v1420 = vmul.f32 1.0, %v1419
    %v1421 = vrcp.pop %v1390
    %v1422 = vmul.f32 %v1390, %v1421
    %v1423 = vsub.f32 1.0, %v1422
    %v1424 = vmul.f32 %v1421, %v1423
    %v1425 = vadd.f32 %v1421, %v1424
    %vm1426 = vweird.f32 %v1390
    %vm1427 = vweird.f32 %v1421
    %vm1428 = vmor %vm1426, %vm1427
    %v1429 = vsel %vm1428, %v1421, %v1425
    %v1430 = vand.u32 2147483647, %v1390
    %vm1431 = vcmp.eq.f32.partialorder %v1430, 8.507059e+37
    %v1432 = vand.u32 %v1390, 2147483648
    %v1433 = vor.u32 1.1754944e-38, %v1432
    %v1434 = vsel %vm1431, %v1433, %v1429
    %v1435 = vmul.f32 1.0, %v1434
    %v1436 = vtanh.pop %v1378
    %v1437 = vmul.f32 %v1420, %v1283
    %v1438 = vmul.f32 %v1405, %v1436
    %v1439 = vadd.f32 %v1437, %v1438
    %v1440 = vtanh.pop %v1439
    %v1441 = vmul.f32 %v1435, %v1440
    %s1442 = scalar_lea.vmem [#allocation8], 48
    %1443 = vst [vmem:[%s1442] sm:$0xff] %v1441
    %s1444 = smul.u32 7, 4
    %s1445 = smul.addr %s1444, 8
    %s1446 = scalar_lea.vmem [#allocation4], %s1445
    %v1447 = vld [vmem:[%s1446] sm:$0xff]
    %v1448 = vld [vmem:[%s1446 + $0x8] sm:$0xff]
    %v1449 = vld [vmem:[%s1446 + $0x10] sm:$0xff]
    %v1450 = vld [vmem:[%s1446 + $0x18] sm:$0xff]
    %1451 = vmatpush.msra.mxu0 %v347
    %1452 = vmatpush.msra.mxu0 %v343
    %1453 = vmatpush.msra.mxu0 %v339
    %1454 = vmatpush.msra.mxu0 %v335
    %1455 = vmatpush.msra.mxu0 %v331
    %1456 = vmatpush.msra.mxu0 %v327
    %1457 = vmatpush.msra.mxu0 %v323
    %1458 = vmatpush.msra.mxu0 %v319
    %1459 = vmatpush.msra.mxu0 %v315
    %1460 = vmatpush.msra.mxu0 %v311
    %1461 = vmatpush.msra.mxu0 %v307
    %1462 = vmatpush.msra.mxu0 %v303
    %1463 = vmatpush.msra.mxu0 %v299
    %1464 = vmatpush.msra.mxu0 %v295
    %1465 = vmatpush.msra.mxu0 %v291
    %1466 = vmatpush.msra.mxu0 %v287
    %1467 = vmatmul.f32.gmra.mxu0 %v1441
    %v1468 = vpop.f32.mrf.mxu0
    %v1469 = vadd.f32 0.0, %v1468
    %1470 = vdwg.mxu0
    %1471 = vmatpush.msra.mxu0 %v348
    %1472 = vmatpush.msra.mxu0 %v344
    %1473 = vmatpush.msra.mxu0 %v340
    %1474 = vmatpush.msra.mxu0 %v336
    %1475 = vmatpush.msra.mxu0 %v332
    %1476 = vmatpush.msra.mxu0 %v328
    %1477 = vmatpush.msra.mxu0 %v324
    %1478 = vmatpush.msra.mxu0 %v320
    %1479 = vmatpush.msra.mxu0 %v316
    %1480 = vmatpush.msra.mxu0 %v312
    %1481 = vmatpush.msra.mxu0 %v308
    %1482 = vmatpush.msra.mxu0 %v304
    %1483 = vmatpush.msra.mxu0 %v300
    %1484 = vmatpush.msra.mxu0 %v296
    %1485 = vmatpush.msra.mxu0 %v292
    %1486 = vmatpush.msra.mxu0 %v288
    %1487 = vmatmul.f32.gmra.mxu0 %v1441
    %v1488 = vpop.f32.mrf.mxu0
    %v1489 = vadd.f32 0.0, %v1488
    %1490 = vdwg.mxu0
    %1491 = vmatpush.msra.mxu0 %v349
    %1492 = vmatpush.msra.mxu0 %v345
    %1493 = vmatpush.msra.mxu0 %v341
    %1494 = vmatpush.msra.mxu0 %v337
    %1495 = vmatpush.msra.mxu0 %v333
    %1496 = vmatpush.msra.mxu0 %v329
    %1497 = vmatpush.msra.mxu0 %v325
    %1498 = vmatpush.msra.mxu0 %v321
    %1499 = vmatpush.msra.mxu0 %v317
    %1500 = vmatpush.msra.mxu0 %v313
    %1501 = vmatpush.msra.mxu0 %v309
    %1502 = vmatpush.msra.mxu0 %v305
    %1503 = vmatpush.msra.mxu0 %v301
    %1504 = vmatpush.msra.mxu0 %v297
    %1505 = vmatpush.msra.mxu0 %v293
    %1506 = vmatpush.msra.mxu0 %v289
    %1507 = vmatmul.f32.gmra.mxu0 %v1441
    %v1508 = vpop.f32.mrf.mxu0
    %v1509 = vadd.f32 0.0, %v1508
    %1510 = vdwg.mxu0
    %1511 = vmatpush.msra.mxu0 %v350
    %1512 = vmatpush.msra.mxu0 %v346
    %1513 = vmatpush.msra.mxu0 %v342
    %1514 = vmatpush.msra.mxu0 %v338
    %1515 = vmatpush.msra.mxu0 %v334
    %1516 = vmatpush.msra.mxu0 %v330
    %1517 = vmatpush.msra.mxu0 %v326
    %1518 = vmatpush.msra.mxu0 %v322
    %1519 = vmatpush.msra.mxu0 %v318
    %1520 = vmatpush.msra.mxu0 %v314
    %1521 = vmatpush.msra.mxu0 %v310
    %1522 = vmatpush.msra.mxu0 %v306
    %1523 = vmatpush.msra.mxu0 %v302
    %1524 = vmatpush.msra.mxu0 %v298
    %1525 = vmatpush.msra.mxu0 %v294
    %1526 = vmatpush.msra.mxu0 %v290
    %1527 = vmatmul.f32.gmra.mxu0 %v1441
    %v1528 = vpop.f32.mrf.mxu0
    %v1529 = vadd.f32 0.0, %v1528
    %1530 = vdwg.mxu0
    %v1531 = vadd.f32 %v1447, %v1469
    %v1532 = vadd.f32 %v1448, %v1489
    %v1533 = vadd.f32 %v1449, %v1509
    %v1534 = vadd.f32 %v1450, %v1529
    %v1535 = vxor.u32 %v1531, 2147483648
    %v1536 = vxor.u32 %v1532, 2147483648
    %v1537 = vxor.u32 %v1533, 2147483648
    %v1538 = vmul.f32 %v1535, 1.442695
    %v1539 = vpow.pop %v1538
    %v1540 = vmul.f32 %v1536, 1.442695
    %v1541 = vpow.pop %v1540
    %v1542 = vmul.f32 %v1537, 1.442695
    %v1543 = vpow.pop %v1542
    %v1544 = vadd.f32 %v1539, 1.0
    %v1545 = vadd.f32 %v1541, 1.0
    %v1546 = vadd.f32 %v1543, 1.0
    %v1547 = vrcp.pop %v1544
    %v1548 = vmul.f32 %v1544, %v1547
    %v1549 = vsub.f32 1.0, %v1548
    %v1550 = vmul.f32 %v1547, %v1549
    %v1551 = vadd.f32 %v1547, %v1550
    %vm1552 = vweird.f32 %v1544
    %vm1553 = vweird.f32 %v1547
    %vm1554 = vmor %vm1552, %vm1553
    %v1555 = vsel %vm1554, %v1547, %v1551
    %v1556 = vand.u32 2147483647, %v1544
    %vm1557 = vcmp.eq.f32.partialorder %v1556, 8.507059e+37
    %v1558 = vand.u32 %v1544, 2147483648
    %v1559 = vor.u32 1.1754944e-38, %v1558
    %v1560 = vsel %vm1557, %v1559, %v1555
    %v1561 = vmul.f32 1.0, %v1560
    %v1562 = vrcp.pop %v1545
    %v1563 = vmul.f32 %v1545, %v1562
    %v1564 = vsub.f32 1.0, %v1563
    %v1565 = vmul.f32 %v1562, %v1564
    %v1566 = vadd.f32 %v1562, %v1565
    %vm1567 = vweird.f32 %v1545
    %vm1568 = vweird.f32 %v1562
    %vm1569 = vmor %vm1567, %vm1568
    %v1570 = vsel %vm1569, %v1562, %v1566
    %v1571 = vand.u32 2147483647, %v1545
    %vm1572 = vcmp.eq.f32.partialorder %v1571, 8.507059e+37
    %v1573 = vand.u32 %v1545, 2147483648
    %v1574 = vor.u32 1.1754944e-38, %v1573
    %v1575 = vsel %vm1572, %v1574, %v1570
    %v1576 = vmul.f32 1.0, %v1575
    %v1577 = vrcp.pop %v1546
    %v1578 = vmul.f32 %v1546, %v1577
    %v1579 = vsub.f32 1.0, %v1578
    %v1580 = vmul.f32 %v1577, %v1579
    %v1581 = vadd.f32 %v1577, %v1580
    %vm1582 = vweird.f32 %v1546
    %vm1583 = vweird.f32 %v1577
    %vm1584 = vmor %vm1582, %vm1583
    %v1585 = vsel %vm1584, %v1577, %v1581
    %v1586 = vand.u32 2147483647, %v1546
    %vm1587 = vcmp.eq.f32.partialorder %v1586, 8.507059e+37
    %v1588 = vand.u32 %v1546, 2147483648
    %v1589 = vor.u32 1.1754944e-38, %v1588
    %v1590 = vsel %vm1587, %v1589, %v1585
    %v1591 = vmul.f32 1.0, %v1590
    %v1592 = vtanh.pop %v1534
    %v1593 = vmul.f32 %v1576, %v1439
    %v1594 = vmul.f32 %v1561, %v1592
    %v1595 = vadd.f32 %v1593, %v1594
    %v1596 = vtanh.pop %v1595
    %v1597 = vmul.f32 %v1591, %v1596
    %s1598 = scalar_lea.vmem [#allocation8], 56
    %1599 = vst [vmem:[%s1598] sm:$0xff] %v1597
    %1600 = vst [vmem:[#allocation2] sm:$0xff] %v1597
    %1601 = vst [vmem:[#allocation3] sm:$0xff] %v1595
    // Predicated region
    $region26: #{tpu_custom_call.1} parent=1 // pred_check
      _
    $region27: #{tpu_custom_call.1} parent=1 // pred_check_branch
      %1603 = sbr.rel (0) target = $region29
    $region28: #{tpu_custom_call.1} parent=1 // pred_region
      %1605 = vsyncadd [#allocation7], 0
      %s1606 = sshll.u32 [#allocation8], 4
      %s1607 = int_to_ptr.vmem [resolvable:$true] %s1606
      %s1608 = sshll.u32 %s4, 4
      %s1609 = int_to_ptr.hbm [resolvable:$true] %s1608
      %1614 = dma.vmem_to_hbm [thread:$0]  %s1607, 1024, %s1609, [#allocation7], 128, 128, 8
    $region29: #{tpu_custom_call.1} parent=1 // pred_fallthru
      _
    // Predicated region
    $region30: #{tpu_custom_call.1} parent=1 // pred_check
      _
    $region31: #{tpu_custom_call.1} parent=1 // pred_check_branch
      %1616 = sbr.rel (0) target = $region33
    $region32: #{tpu_custom_call.1} parent=1 // pred_region
      %1618 = dma.done [#allocation7], 1024
    $region33: #{tpu_custom_call.1} parent=1 // pred_fallthru
      _
    %1619 = vsyncpa [#allocation6], 1
    %1620 = vsyncpa [#allocation7], 1

</llo_original>
